<compile_context>
chip_gen: v5e
topology: v5e:2x2
jax: 0.10.0
libtpu: 0.0.40
codegen_flags: <defaults>
</compile_context>

<pallas_src>
import functools

import jax
import jax.numpy as jnp
from jax.experimental import pallas as pl
from jax.experimental.pallas import tpu as pltpu

# Layer widths of the PyTorch nn.Sequential
DIMS = [1, 5, 10, 10, 10, 10, 10, 5, 1]
NUM_LAYERS = len(DIMS) - 1          # 8 Linear+Tanh layers
PAD = 128                           # lane padding for every feature dim


def _round_up(x, m):
    return ((x + m - 1) // m) * m


def _deep_mlp_kernel(x_ref, w_ref, b_ref, o_ref, *, use_bf16):
    # x_ref: (TB, 1)   w_ref: (8, 128, 128)   b_ref: (8, 1, 128)   o_ref: (TB, 1)
    x = x_ref[...].astype(jnp.float32)                       # (TB, 1)

    # Layer 0: Linear(1, 5).  Contraction dim is 1, so a lane-broadcast multiply
    # does the job (no MXU) and produces the 128-lane-padded activation directly;
    # padded lanes are exactly zero (zero weight cols / bias lanes, tanh(0)=0).
    w0_row = w_ref[0][0:1, :]                                # (1, 128)
    h = jnp.tanh(x * w0_row + b_ref[0])                      # (TB, 128)

    mm_dtype = jnp.bfloat16 if use_bf16 else jnp.float32
    # Layers 1..7: (TB,128) x (128,128) MXU matmuls, f32 accumulate, f32 bias+tanh.
    for l in range(1, NUM_LAYERS):
        w = w_ref[l].astype(mm_dtype)                        # (128, 128)
        z = jnp.dot(h.astype(mm_dtype), w,
                    preferred_element_type=jnp.float32)      # (TB, 128) f32
        h = jnp.tanh(z + b_ref[l])                           # padded lanes stay 0

    # Last layer is Linear(5, 1): only lane 0 is real data.
    o_ref[...] = h[:, 0:1].astype(o_ref.dtype)


def pack_params(weights, biases):
    """Pad + stack all 8 layers' parameters once (keep out of the per-call path).

    weights[i]: (DIMS[i], DIMS[i+1]);  biases[i]: (DIMS[i+1],).
    Returns w_stacked (8, 128, 128) f32 and b_stacked (8, 1, 128) f32.
    """
    w_stacked = jnp.zeros((NUM_LAYERS, PAD, PAD), jnp.float32)
    b_stacked = jnp.zeros((NUM_LAYERS, 1, PAD), jnp.float32)
    for l, (w, b) in enumerate(zip(weights, biases)):
        w_stacked = w_stacked.at[l, :w.shape[0], :w.shape[1]].set(w)
        b_stacked = b_stacked.at[l, 0, :b.shape[0]].set(b)
    return w_stacked, b_stacked


def deep_mlp_forward(x, w_stacked, b_stacked, *, block_rows=512, use_bf16=False):
    """x: (N, 1) float32 -> (N, 1) float32, same math as the PyTorch DeepMLP."""
    n = x.shape[0]
    # Batch tile: as large as requested (sweep 512-2048 for big N), but never
    # bigger than the (8-row-aligned) problem so tiny batches don't over-pad.
    tb = min(block_rows, _round_up(n, 8))
    n_pad = _round_up(n, tb)

    x_p = x.astype(jnp.float32)
    if n_pad != n:
        x_p = jnp.pad(x_p, ((0, n_pad - n), (0, 0)))

    kernel = functools.partial(_deep_mlp_kernel, use_bf16=use_bf16)

    # VMEM budget: stacked params (~0.5 MiB, double-buffered) + (tb,1) I/O tiles
    # + (tb,128) f32 activation working set -> a few MiB at tb=512..2048.
    # 32 MiB is comfortably under every generation's limit (v7x: 64 MiB phys).
    vmem_limit = 32 * 1024 * 1024

    out = pl.pallas_call(
        kernel,
        out_shape=jax.ShapeDtypeStruct((n_pad, 1), jnp.float32),
        grid_spec=pltpu.PrefetchScalarGridSpec(
            num_scalar_prefetch=0,
            grid=(n_pad // tb,),
            in_specs=[
                pl.BlockSpec((tb, 1), lambda i: (i, 0)),                    # x
                pl.BlockSpec((NUM_LAYERS, PAD, PAD), lambda i: (0, 0, 0)),  # W stack
                pl.BlockSpec((NUM_LAYERS, 1, PAD), lambda i: (0, 0, 0)),    # b stack
            ],
            out_specs=pl.BlockSpec((tb, 1), lambda i: (i, 0)),
        ),
        compiler_params=pltpu.CompilerParams(
            dimension_semantics=("parallel",),   # batch-parallel (megacore on v7x)
            vmem_limit_bytes=vmem_limit,
        ),
    )(x_p, w_stacked, b_stacked)

    return out[:n]                               # (N, 1), matches PyTorch output


def init_params(key):
    """Deterministic init mimicking nn.Linear's U(-1/sqrt(fan_in), 1/sqrt(fan_in))."""
    weights, biases = [], []
    for i in range(NUM_LAYERS):
        fan_in, fan_out = DIMS[i], DIMS[i + 1]
        key, kw, kb = jax.random.split(key, 3)
        bound = 1.0 / (fan_in ** 0.5)
        weights.append(jax.random.uniform(kw, (fan_in, fan_out), jnp.float32,
                                          -bound, bound))
        biases.append(jax.random.uniform(kb, (fan_out,), jnp.float32,
                                         -bound, bound))
    return weights, biases


def reference_forward(x, weights, biases):
    h = x
    for w, b in zip(weights, biases):
        h = jnp.tanh(jnp.dot(h, w, precision=jax.lax.Precision.HIGHEST) + b)
    return h


if __name__ == "__main__":
    key = jax.random.PRNGKey(0)
    key, kx = jax.random.split(key)

    # Small problem; n is not a tile multiple (exercises padding) and gives
    # >=2 grid steps at block_rows=512 (keeps both v7x TensorCores busy).
    n = 1000
    x = jax.random.normal(kx, (n, 1), jnp.float32)
    weights, biases = init_params(key)
    w_stacked, b_stacked = pack_params(weights, biases)   # packed once, reused

    ref = reference_forward(x, weights, biases)

    out_f32 = jax.block_until_ready(
        deep_mlp_forward(x, w_stacked, b_stacked, block_rows=512, use_bf16=False))
    out_bf16 = jax.block_until_ready(
        deep_mlp_forward(x, w_stacked, b_stacked, block_rows=512, use_bf16=True))

    assert out_f32.shape == (n, 1)
    assert out_bf16.shape == (n, 1)
    # f32 path matches the f32 reference essentially exactly; loose bound kept
    # robust to backend matmul-precision defaults.
    assert float(jnp.max(jnp.abs(out_f32 - ref))) < 2e-2, "f32 path mismatch"
    # bf16-input / f32-accumulate path: ~1e-3 level deviation expected.
    assert float(jnp.max(jnp.abs(out_bf16 - ref))) < 5e-2, "bf16 path mismatch"

    print("KERNEL_OK")
</pallas_src>

<mosaic_0001>
module attributes {stable_mosaic.version = 11 : i64} {
  func.func @_deep_mlp_kernel(%arg0: i32, %arg1: memref<512x1xf32, #tpu.memory_space<vmem>>, %arg2: memref<8x128x128xf32, #tpu.memory_space<vmem>>, %arg3: memref<8x1x128xf32, #tpu.memory_space<vmem>>, %arg4: memref<512x1xf32, #tpu.memory_space<vmem>>) attributes {dimension_semantics = [#tpu.dimension_semantics<parallel>], iteration_bounds = array<i64: 2>, scalar_prefetch = 0 : i64, scratch_operands = 0 : i64, tpu.core_type = #tpu.core_type<tc>, window_params = [{transform_indices = @transform_0, window_bounds = array<i64: 512, 1>}, {pipeline_mode = #tpu.pipeline_mode<synchronous>, transform_indices = @transform_1, window_bounds = array<i64: 8, 128, 128>}, {pipeline_mode = #tpu.pipeline_mode<synchronous>, transform_indices = @transform_2, window_bounds = array<i64: 8, 1, 128>}, {transform_indices = @transform_3, window_bounds = array<i64: 512, 1>}]} {
    %c0 = arith.constant 0 : index
    %c0_0 = arith.constant 0 : index
    %0 = vector.load %arg1[%c0, %c0_0] : memref<512x1xf32, #tpu.memory_space<vmem>>, vector<512x1xf32>
    %c0_1 = arith.constant 0 : index
    %c0_2 = arith.constant 0 : index
    %c0_3 = arith.constant 0 : index
    %1 = vector.load %arg2[%c0_1, %c0_2, %c0_3] : memref<8x128x128xf32, #tpu.memory_space<vmem>>, vector<1x128x128xf32>
    %2 = vector.shape_cast %1 : vector<1x128x128xf32> to vector<128x128xf32>
    %3 = vector.extract_strided_slice %2 {offsets = [0, 0], sizes = [1, 128], strides = [1, 1]} : vector<128x128xf32> to vector<1x128xf32>
    %4 = vector.broadcast %0 : vector<512x1xf32> to vector<512x128xf32>
    %5 = vector.broadcast %3 : vector<1x128xf32> to vector<512x128xf32>
    %6 = arith.mulf %4, %5 : vector<512x128xf32>
    %c0_4 = arith.constant 0 : index
    %c0_5 = arith.constant 0 : index
    %c0_6 = arith.constant 0 : index
    %7 = vector.load %arg3[%c0_4, %c0_5, %c0_6] : memref<8x1x128xf32, #tpu.memory_space<vmem>>, vector<1x1x128xf32>
    %8 = vector.shape_cast %7 : vector<1x1x128xf32> to vector<1x128xf32>
    %9 = vector.broadcast %8 : vector<1x128xf32> to vector<512x128xf32>
    %10 = arith.addf %6, %9 : vector<512x128xf32>
    %11 = math.tanh %10 : vector<512x128xf32>
    %c1 = arith.constant 1 : index
    %c0_7 = arith.constant 0 : index
    %c0_8 = arith.constant 0 : index
    %12 = vector.load %arg2[%c1, %c0_7, %c0_8] : memref<8x128x128xf32, #tpu.memory_space<vmem>>, vector<1x128x128xf32>
    %13 = vector.shape_cast %12 : vector<1x128x128xf32> to vector<128x128xf32>
    %cst = arith.constant dense<0.000000e+00> : vector<512x128xf32>
    %14 = tpu.matmul %11, %13, %cst {dimension_numbers = #tpu.dot_dimension_numbers<[1], [0], [0], [1], [0, 0, 1, 1], [], []>} : vector<512x128xf32>, vector<128x128xf32>, vector<512x128xf32> -> vector<512x128xf32>
    %c1_9 = arith.constant 1 : index
    %c0_10 = arith.constant 0 : index
    %c0_11 = arith.constant 0 : index
    %15 = vector.load %arg3[%c1_9, %c0_10, %c0_11] : memref<8x1x128xf32, #tpu.memory_space<vmem>>, vector<1x1x128xf32>
    %16 = vector.shape_cast %15 : vector<1x1x128xf32> to vector<1x128xf32>
    %17 = vector.broadcast %16 : vector<1x128xf32> to vector<512x128xf32>
    %18 = arith.addf %14, %17 : vector<512x128xf32>
    %19 = math.tanh %18 : vector<512x128xf32>
    %c2 = arith.constant 2 : index
    %c0_12 = arith.constant 0 : index
    %c0_13 = arith.constant 0 : index
    %20 = vector.load %arg2[%c2, %c0_12, %c0_13] : memref<8x128x128xf32, #tpu.memory_space<vmem>>, vector<1x128x128xf32>
    %21 = vector.shape_cast %20 : vector<1x128x128xf32> to vector<128x128xf32>
    %cst_14 = arith.constant dense<0.000000e+00> : vector<512x128xf32>
    %22 = tpu.matmul %19, %21, %cst_14 {dimension_numbers = #tpu.dot_dimension_numbers<[1], [0], [0], [1], [0, 0, 1, 1], [], []>} : vector<512x128xf32>, vector<128x128xf32>, vector<512x128xf32> -> vector<512x128xf32>
    %c2_15 = arith.constant 2 : index
    %c0_16 = arith.constant 0 : index
    %c0_17 = arith.constant 0 : index
    %23 = vector.load %arg3[%c2_15, %c0_16, %c0_17] : memref<8x1x128xf32, #tpu.memory_space<vmem>>, vector<1x1x128xf32>
    %24 = vector.shape_cast %23 : vector<1x1x128xf32> to vector<1x128xf32>
    %25 = vector.broadcast %24 : vector<1x128xf32> to vector<512x128xf32>
    %26 = arith.addf %22, %25 : vector<512x128xf32>
    %27 = math.tanh %26 : vector<512x128xf32>
    %c3 = arith.constant 3 : index
    %c0_18 = arith.constant 0 : index
    %c0_19 = arith.constant 0 : index
    %28 = vector.load %arg2[%c3, %c0_18, %c0_19] : memref<8x128x128xf32, #tpu.memory_space<vmem>>, vector<1x128x128xf32>
    %29 = vector.shape_cast %28 : vector<1x128x128xf32> to vector<128x128xf32>
    %cst_20 = arith.constant dense<0.000000e+00> : vector<512x128xf32>
    %30 = tpu.matmul %27, %29, %cst_20 {dimension_numbers = #tpu.dot_dimension_numbers<[1], [0], [0], [1], [0, 0, 1, 1], [], []>} : vector<512x128xf32>, vector<128x128xf32>, vector<512x128xf32> -> vector<512x128xf32>
    %c3_21 = arith.constant 3 : index
    %c0_22 = arith.constant 0 : index
    %c0_23 = arith.constant 0 : index
    %31 = vector.load %arg3[%c3_21, %c0_22, %c0_23] : memref<8x1x128xf32, #tpu.memory_space<vmem>>, vector<1x1x128xf32>
    %32 = vector.shape_cast %31 : vector<1x1x128xf32> to vector<1x128xf32>
    %33 = vector.broadcast %32 : vector<1x128xf32> to vector<512x128xf32>
    %34 = arith.addf %30, %33 : vector<512x128xf32>
    %35 = math.tanh %34 : vector<512x128xf32>
    %c4 = arith.constant 4 : index
    %c0_24 = arith.constant 0 : index
    %c0_25 = arith.constant 0 : index
    %36 = vector.load %arg2[%c4, %c0_24, %c0_25] : memref<8x128x128xf32, #tpu.memory_space<vmem>>, vector<1x128x128xf32>
    %37 = vector.shape_cast %36 : vector<1x128x128xf32> to vector<128x128xf32>
    %cst_26 = arith.constant dense<0.000000e+00> : vector<512x128xf32>
    %38 = tpu.matmul %35, %37, %cst_26 {dimension_numbers = #tpu.dot_dimension_numbers<[1], [0], [0], [1], [0, 0, 1, 1], [], []>} : vector<512x128xf32>, vector<128x128xf32>, vector<512x128xf32> -> vector<512x128xf32>
    %c4_27 = arith.constant 4 : index
    %c0_28 = arith.constant 0 : index
    %c0_29 = arith.constant 0 : index
    %39 = vector.load %arg3[%c4_27, %c0_28, %c0_29] : memref<8x1x128xf32, #tpu.memory_space<vmem>>, vector<1x1x128xf32>
    %40 = vector.shape_cast %39 : vector<1x1x128xf32> to vector<1x128xf32>
    %41 = vector.broadcast %40 : vector<1x128xf32> to vector<512x128xf32>
    %42 = arith.addf %38, %41 : vector<512x128xf32>
    %43 = math.tanh %42 : vector<512x128xf32>
    %c5 = arith.constant 5 : index
    %c0_30 = arith.constant 0 : index
    %c0_31 = arith.constant 0 : index
    %44 = vector.load %arg2[%c5, %c0_30, %c0_31] : memref<8x128x128xf32, #tpu.memory_space<vmem>>, vector<1x128x128xf32>
    %45 = vector.shape_cast %44 : vector<1x128x128xf32> to vector<128x128xf32>
    %cst_32 = arith.constant dense<0.000000e+00> : vector<512x128xf32>
    %46 = tpu.matmul %43, %45, %cst_32 {dimension_numbers = #tpu.dot_dimension_numbers<[1], [0], [0], [1], [0, 0, 1, 1], [], []>} : vector<512x128xf32>, vector<128x128xf32>, vector<512x128xf32> -> vector<512x128xf32>
    %c5_33 = arith.constant 5 : index
    %c0_34 = arith.constant 0 : index
    %c0_35 = arith.constant 0 : index
    %47 = vector.load %arg3[%c5_33, %c0_34, %c0_35] : memref<8x1x128xf32, #tpu.memory_space<vmem>>, vector<1x1x128xf32>
    %48 = vector.shape_cast %47 : vector<1x1x128xf32> to vector<1x128xf32>
    %49 = vector.broadcast %48 : vector<1x128xf32> to vector<512x128xf32>
    %50 = arith.addf %46, %49 : vector<512x128xf32>
    %51 = math.tanh %50 : vector<512x128xf32>
    %c6 = arith.constant 6 : index
    %c0_36 = arith.constant 0 : index
    %c0_37 = arith.constant 0 : index
    %52 = vector.load %arg2[%c6, %c0_36, %c0_37] : memref<8x128x128xf32, #tpu.memory_space<vmem>>, vector<1x128x128xf32>
    %53 = vector.shape_cast %52 : vector<1x128x128xf32> to vector<128x128xf32>
    %cst_38 = arith.constant dense<0.000000e+00> : vector<512x128xf32>
    %54 = tpu.matmul %51, %53, %cst_38 {dimension_numbers = #tpu.dot_dimension_numbers<[1], [0], [0], [1], [0, 0, 1, 1], [], []>} : vector<512x128xf32>, vector<128x128xf32>, vector<512x128xf32> -> vector<512x128xf32>
    %c6_39 = arith.constant 6 : index
    %c0_40 = arith.constant 0 : index
    %c0_41 = arith.constant 0 : index
    %55 = vector.load %arg3[%c6_39, %c0_40, %c0_41] : memref<8x1x128xf32, #tpu.memory_space<vmem>>, vector<1x1x128xf32>
    %56 = vector.shape_cast %55 : vector<1x1x128xf32> to vector<1x128xf32>
    %57 = vector.broadcast %56 : vector<1x128xf32> to vector<512x128xf32>
    %58 = arith.addf %54, %57 : vector<512x128xf32>
    %59 = math.tanh %58 : vector<512x128xf32>
    %c7 = arith.constant 7 : index
    %c0_42 = arith.constant 0 : index
    %c0_43 = arith.constant 0 : index
    %60 = vector.load %arg2[%c7, %c0_42, %c0_43] : memref<8x128x128xf32, #tpu.memory_space<vmem>>, vector<1x128x128xf32>
    %61 = vector.shape_cast %60 : vector<1x128x128xf32> to vector<128x128xf32>
    %cst_44 = arith.constant dense<0.000000e+00> : vector<512x128xf32>
    %62 = tpu.matmul %59, %61, %cst_44 {dimension_numbers = #tpu.dot_dimension_numbers<[1], [0], [0], [1], [0, 0, 1, 1], [], []>} : vector<512x128xf32>, vector<128x128xf32>, vector<512x128xf32> -> vector<512x128xf32>
    %c7_45 = arith.constant 7 : index
    %c0_46 = arith.constant 0 : index
    %c0_47 = arith.constant 0 : index
    %63 = vector.load %arg3[%c7_45, %c0_46, %c0_47] : memref<8x1x128xf32, #tpu.memory_space<vmem>>, vector<1x1x128xf32>
    %64 = vector.shape_cast %63 : vector<1x1x128xf32> to vector<1x128xf32>
    %65 = vector.broadcast %64 : vector<1x128xf32> to vector<512x128xf32>
    %66 = arith.addf %62, %65 : vector<512x128xf32>
    %67 = math.tanh %66 : vector<512x128xf32>
    %68 = vector.extract_strided_slice %67 {offsets = [0, 0], sizes = [512, 1], strides = [1, 1]} : vector<512x128xf32> to vector<512x1xf32>
    %c0_48 = arith.constant 0 : index
    %c0_49 = arith.constant 0 : index
    %69 = vector.load %arg4[%c0_48, %c0_49] : memref<512x1xf32, #tpu.memory_space<vmem>>, vector<512x1xf32>
    tpu.vector_store %arg4[%c0_48, %c0_49], %68 {strides = array<i32>} : memref<512x1xf32, #tpu.memory_space<vmem>>, vector<512x1xf32>,
    return
  }
  func.func @transform_0(%arg0: i32) -> (i32, i32) {
    %c0_i32 = arith.constant 0 : i32
    %c0_i32_0 = arith.constant 0 : i32
    return %arg0, %c0_i32 : i32, i32
  }
  func.func @transform_1(%arg0: i32) -> (i32, i32, i32) {
    %c0_i32 = arith.constant 0 : i32
    %c0_i32_0 = arith.constant 0 : i32
    %c0_i32_1 = arith.constant 0 : i32
    %c0_i32_2 = arith.constant 0 : i32
    return %c0_i32, %c0_i32_0, %c0_i32_1 : i32, i32, i32
  }
  func.func @transform_2(%arg0: i32) -> (i32, i32, i32) {
    %c0_i32 = arith.constant 0 : i32
    %c0_i32_0 = arith.constant 0 : i32
    %c0_i32_1 = arith.constant 0 : i32
    %c0_i32_2 = arith.constant 0 : i32
    return %c0_i32, %c0_i32_0, %c0_i32_1 : i32, i32, i32
  }
  func.func @transform_3(%arg0: i32) -> (i32, i32) {
    %c0_i32 = arith.constant 0 : i32
    %c0_i32_0 = arith.constant 0 : i32
    return %arg0, %c0_i32 : i32, i32
  }
}

</mosaic_0001>

<llo_original>
// kernel: tpu_custom_call.1
$region0: #{tpu_custom_call.1}
  #allocation0 [shape = 'u32[]', space=smem, size = 0x4, offset = 0x4, fixed_abs, tag = 'smem constant byte address 0x4 - core index']
  #allocation1 [shape = 'u32[72,128]{1,0:T(1,128)}', space=vmem, size = 0x9000, scoped, tag = 'internal scratch']
  %s0 = inlined_call_operand.vmem [shape: f32[1024,1], index: 0, kind: input, shape index: {}]
  %s1 = inlined_call_operand.vmem [shape: f32[8,128,128], index: 1, kind: input, shape index: {}]
  %s2 = inlined_call_operand.vmem [shape: f32[8,1,128], index: 2, kind: input, shape index: {}]
  %s3 = inlined_call_operand.vmem [shape: f32[1024,1], index: 3, kind: output, shape index: {}]
  %s4 = sld [smem:[#allocation0]]
  $region45: #{tpu_custom_call.1} parent=0
    _
  %s6 = ssub.s32 1, %s4
  %s7 = scalar_select 0, %s6, %s4
  loop: start=0, step=1, limit=4
  $region2: #{tpu_custom_call.1} parent=0 // loop_pre_header
    _
  $region3: #{tpu_custom_call.1} parent=0 // loop_header
    %s9 = sphi 0, %s13
    %p10 = scmp.ge.s32.totalorder %s9, 4
    %s19 = sphi 0, %s21
    %s22 = sphi 0, %s19
    %s23 = sphi 0, %s22
    %s39 = sphi 0, %s23
    %s43 = sphi 0, %s43
    %s45 = sphi 0, %s43
    %s46 = sphi 0, %s45
    %s60 = sphi 0, %s46
    %s64 = sphi 0, %s64
    %s66 = sphi 0, %s64
    %s67 = sphi 0, %s66
    %s81 = sphi 0, %s67
    %s87 = sphi 0, %s89
    %s90 = sphi 0, %s87
    %s91 = sphi 0, %s90
    %s107 = sphi 0, %s91
  $region4: #{tpu_custom_call.1} parent=0 // loop_header_branch
    %12 = sbr.rel (%p10) target = $region8
  $region5: #{tpu_custom_call.1} parent=0 // loop_body
    %s14 = ssub.s32 %s9, 1
    %s15 = ssub.s32 %s9, 2
    %s16 = sadd.s32 %s9, 1
    %s17 = ssub.s32 %s9, %s16
    %p18 = scmp.eq.s32.totalorder %s17, 0
    %s20 = sadd.s32 %s19, 1
    %s21 = scalar_select %p18, %s19, %s20
    %p24 = pneg %p18
    %p25 = scmp.eq.s32.totalorder %s9, 1
    %p26 = por %p24, %p25
    %p27 = scmp.ne.s32.totalorder %s19, %s22
    %p28 = scmp.eq.s32.totalorder %s9, 0
    %p29 = por %p27, %p28
    %p30 = scmp.ne.s32.totalorder %s19, %s22
    %p31 = scmp.eq.s32.totalorder %s14, 1
    %p32 = por %p30, %p31
    %p33 = scmp.ne.s32.totalorder %s22, %s23
    %p34 = scmp.eq.s32.totalorder %s14, 0
    %p35 = por %p33, %p34
    %p36 = scmp.ne.s32.totalorder %s22, %s23
    %p37 = scmp.eq.s32.totalorder %s15, 1
    %p38 = por %p36, %p37
    %p40 = scmp.ne.s32.totalorder %s23, %s39
    %p41 = scmp.eq.s32.totalorder %s15, 0
    %p42 = por %p40, %p41
    %s44 = sadd.s32 %s43, 1
    %p47 = scmp.eq.s32.totalorder %s9, 1
    %p48 = scmp.ne.s32.totalorder %s43, %s45
    %p49 = scmp.eq.s32.totalorder %s9, 0
    %p50 = por %p48, %p49
    %p51 = scmp.ne.s32.totalorder %s43, %s45
    %p52 = scmp.eq.s32.totalorder %s14, 1
    %p53 = por %p51, %p52
    %p54 = scmp.ne.s32.totalorder %s45, %s46
    %p55 = scmp.eq.s32.totalorder %s14, 0
    %p56 = por %p54, %p55
    %p57 = scmp.ne.s32.totalorder %s45, %s46
    %p58 = scmp.eq.s32.totalorder %s15, 1
    %p59 = por %p57, %p58
    %p61 = scmp.ne.s32.totalorder %s46, %s60
    %p62 = scmp.eq.s32.totalorder %s15, 0
    %p63 = por %p61, %p62
    %s65 = sadd.s32 %s64, 1
    %p68 = scmp.eq.s32.totalorder %s9, 1
    %p69 = scmp.ne.s32.totalorder %s64, %s66
    %p70 = scmp.eq.s32.totalorder %s9, 0
    %p71 = por %p69, %p70
    %p72 = scmp.ne.s32.totalorder %s64, %s66
    %p73 = scmp.eq.s32.totalorder %s14, 1
    %p74 = por %p72, %p73
    %p75 = scmp.ne.s32.totalorder %s66, %s67
    %p76 = scmp.eq.s32.totalorder %s14, 0
    %p77 = por %p75, %p76
    %p78 = scmp.ne.s32.totalorder %s66, %s67
    %p79 = scmp.eq.s32.totalorder %s15, 1
    %p80 = por %p78, %p79
    %p82 = scmp.ne.s32.totalorder %s67, %s81
    %p83 = scmp.eq.s32.totalorder %s15, 0
    %p84 = por %p82, %p83
    %s85 = ssub.s32 %s9, %s16
    %p86 = scmp.eq.s32.totalorder %s85, 0
    %s88 = sadd.s32 %s87, 1
    %s89 = scalar_select %p86, %s87, %s88
    %p92 = pneg %p86
    %p93 = scmp.eq.s32.totalorder %s9, 1
    %p94 = por %p92, %p93
    %p95 = scmp.ne.s32.totalorder %s87, %s90
    %p96 = scmp.eq.s32.totalorder %s9, 0
    %p97 = por %p95, %p96
    %p98 = scmp.ne.s32.totalorder %s87, %s90
    %p99 = scmp.eq.s32.totalorder %s14, 1
    %p100 = por %p98, %p99
    %p101 = scmp.ne.s32.totalorder %s90, %s91
    %p102 = scmp.eq.s32.totalorder %s14, 0
    %p103 = por %p101, %p102
    %p104 = scmp.ne.s32.totalorder %s90, %s91
    %p105 = scmp.eq.s32.totalorder %s15, 1
    %p106 = por %p104, %p105
    %p108 = scmp.ne.s32.totalorder %s91, %s107
    %p109 = scmp.eq.s32.totalorder %s15, 0
    %p110 = por %p108, %p109
    %p111 = scmp.le.s32.totalorder 1, %s9
    %p112 = scmp.lt.s32.totalorder %s9, 3
    %p113 = pnand %p111, %p112
    %p114 = pneg %p113
    // Predicated region
    $region9: #{tpu_custom_call.1} parent=5 // pred_check
      _
    $region10: #{tpu_custom_call.1} parent=5 // pred_check_branch
      %116 = sbr.rel (%p113) target = $region12
    $region11: #{tpu_custom_call.1} parent=5 // pred_region
      %s117 = ssub.s32 %s9, 1
      // Predicated region
      $region13: #{tpu_custom_call.1} parent=11 // pred_check
        %p118 = pneg %p56
      $region14: #{tpu_custom_call.1} parent=11 // pred_check_branch
        %120 = sbr.rel (%p118) target = $region16
      $region15: #{tpu_custom_call.1} parent=11 // pred_region
        _
      $region16: #{tpu_custom_call.1} parent=11 // pred_fallthru
        _
      // Predicated region
      $region17: #{tpu_custom_call.1} parent=11 // pred_check
        %p121 = pneg %p77
      $region18: #{tpu_custom_call.1} parent=11 // pred_check_branch
        %123 = sbr.rel (%p121) target = $region20
      $region19: #{tpu_custom_call.1} parent=11 // pred_region
        _
      $region20: #{tpu_custom_call.1} parent=11 // pred_fallthru
        _
    $region12: #{tpu_custom_call.1} parent=5 // pred_fallthru
      _
    %p124 = scmp.lt.s32.totalorder %s9, 2
    // Predicated region
    $region21: #{tpu_custom_call.1} parent=5 // pred_check
      %p125 = pneg %p124
    $region22: #{tpu_custom_call.1} parent=5 // pred_check_branch
      %127 = sbr.rel (%p125) target = $region24
    $region23: #{tpu_custom_call.1} parent=5 // pred_region
      // Predicated region
      $region25: #{tpu_custom_call.1} parent=23 // pred_check
        %p128 = pneg %p29
      $region26: #{tpu_custom_call.1} parent=23 // pred_check_branch
        %130 = sbr.rel (%p128) target = $region28
      $region27: #{tpu_custom_call.1} parent=23 // pred_region
        %s131 = smul.u32 64, %s9
        %p132 = scmp.lt.s32.totalorder %s131, 127
        %s133 = scalar_select %p132, %s131, 127
        %s134 = smul.addr %s133, 8
        %s135 = scalar_lea.vmem %s0, %s134
        %s136 = smul.u32 64, %s9
      $region28: #{tpu_custom_call.1} parent=23 // pred_fallthru
        _
    $region24: #{tpu_custom_call.1} parent=5 // pred_fallthru
      _
    %p137 = scmp.le.s32.totalorder 1, %s9
    %p138 = scmp.lt.s32.totalorder %s9, 3
    %p139 = pnand %p137, %p138
    %p140 = pneg %p139
    // Predicated region
    $region29: #{tpu_custom_call.1} parent=5 // pred_check
      _
    $region30: #{tpu_custom_call.1} parent=5 // pred_check_branch
      %142 = sbr.rel (%p139) target = $region32
    $region31: #{tpu_custom_call.1} parent=5 // pred_region
      %s143 = ssub.s32 %s9, 1
      %s144 = smul.u32 64, %s14
      %p145 = scmp.lt.s32.totalorder %s144, 127
      %s146 = scalar_select %p145, %s144, 127
      %s147 = smul.addr %s146, 8
      %s148 = scalar_lea.vmem %s0, %s147
      %p149 = pneg %p35
      %p150 = pneg %p32
      %p151 = pneg %p56
      %p152 = pneg %p53
      %p153 = pneg %p77
      %p154 = pneg %p74
      %p155 = pneg %p103
      %p156 = pneg %p100
      %s157 = smul.u32 64, %s14
      %p158 = scmp.lt.s32.totalorder %s157, 127
      %s159 = scalar_select %p158, %s157, 127
      %s160 = smul.addr %s159, 8
      %s161 = scalar_lea.vmem %s3, %s160
      %s162 = smul.u32 64, %s14
      %p163 = scmp.lt.s32.totalorder %s162, 127
      %s164 = scalar_select %p163, %s162, 127
      %s165 = smul.addr %s164, 8
      %s166 = scalar_lea.vmem %s0, %s165
      %s167 = smul.u32 64, %s14
      %s168 = smul.u32 64, %s14
      %p169 = scmp.lt.s32.totalorder %s168, 127
      %s170 = scalar_select %p169, %s168, 127
      %s171 = smul.addr %s170, 8
      %s172 = scalar_lea.vmem %s3, %s171
      %s173 = smul.u32 64, %s14
      %v174 = vld [vmem:[%s166] sm:$0xff]
      %v175 = vld [vmem:[%s166 + $0x8] sm:$0xff]
      %v176 = vld [vmem:[%s166 + $0x10] sm:$0xff]
      %v177 = vld [vmem:[%s166 + $0x18] sm:$0xff]
      %v178 = vld [vmem:[%s166 + $0x20] sm:$0xff]
      %v179 = vld [vmem:[%s166 + $0x28] sm:$0xff]
      %v180 = vld [vmem:[%s166 + $0x30] sm:$0xff]
      %v181 = vld [vmem:[%s166 + $0x38] sm:$0xff]
      %v182 = vld [vmem:[%s166 + $0x40] sm:$0xff]
      %v183 = vld [vmem:[%s166 + $0x48] sm:$0xff]
      %v184 = vld [vmem:[%s166 + $0x50] sm:$0xff]
      %v185 = vld [vmem:[%s166 + $0x58] sm:$0xff]
      %v186 = vld [vmem:[%s166 + $0x60] sm:$0xff]
      %v187 = vld [vmem:[%s166 + $0x68] sm:$0xff]
      %v188 = vld [vmem:[%s166 + $0x70] sm:$0xff]
      %v189 = vld [vmem:[%s166 + $0x78] sm:$0xff]
      %v190 = vld [vmem:[%s166 + $0x80] sm:$0xff]
      %v191 = vld [vmem:[%s166 + $0x88] sm:$0xff]
      %v192 = vld [vmem:[%s166 + $0x90] sm:$0xff]
      %v193 = vld [vmem:[%s166 + $0x98] sm:$0xff]
      %v194 = vld [vmem:[%s166 + $0xa0] sm:$0xff]
      %v195 = vld [vmem:[%s166 + $0xa8] sm:$0xff]
      %v196 = vld [vmem:[%s166 + $0xb0] sm:$0xff]
      %v197 = vld [vmem:[%s166 + $0xb8] sm:$0xff]
      %v198 = vld [vmem:[%s166 + $0xc0] sm:$0xff]
      %v199 = vld [vmem:[%s166 + $0xc8] sm:$0xff]
      %v200 = vld [vmem:[%s166 + $0xd0] sm:$0xff]
      %v201 = vld [vmem:[%s166 + $0xd8] sm:$0xff]
      %v202 = vld [vmem:[%s166 + $0xe0] sm:$0xff]
      %v203 = vld [vmem:[%s166 + $0xe8] sm:$0xff]
      %v204 = vld [vmem:[%s166 + $0xf0] sm:$0xff]
      %v205 = vld [vmem:[%s166 + $0xf8] sm:$0xff]
      %v206 = vld [vmem:[%s166 + $0x100] sm:$0xff]
      %v207 = vld [vmem:[%s166 + $0x108] sm:$0xff]
      %v208 = vld [vmem:[%s166 + $0x110] sm:$0xff]
      %v209 = vld [vmem:[%s166 + $0x118] sm:$0xff]
      %v210 = vld [vmem:[%s166 + $0x120] sm:$0xff]
      %v211 = vld [vmem:[%s166 + $0x128] sm:$0xff]
      %v212 = vld [vmem:[%s166 + $0x130] sm:$0xff]
      %v213 = vld [vmem:[%s166 + $0x138] sm:$0xff]
      %v214 = vld [vmem:[%s166 + $0x140] sm:$0xff]
      %v215 = vld [vmem:[%s166 + $0x148] sm:$0xff]
      %v216 = vld [vmem:[%s166 + $0x150] sm:$0xff]
      %v217 = vld [vmem:[%s166 + $0x158] sm:$0xff]
      %v218 = vld [vmem:[%s166 + $0x160] sm:$0xff]
      %v219 = vld [vmem:[%s166 + $0x168] sm:$0xff]
      %v220 = vld [vmem:[%s166 + $0x170] sm:$0xff]
      %v221 = vld [vmem:[%s166 + $0x178] sm:$0xff]
      %v222 = vld [vmem:[%s166 + $0x180] sm:$0xff]
      %v223 = vld [vmem:[%s166 + $0x188] sm:$0xff]
      %v224 = vld [vmem:[%s166 + $0x190] sm:$0xff]
      %v225 = vld [vmem:[%s166 + $0x198] sm:$0xff]
      %v226 = vld [vmem:[%s166 + $0x1a0] sm:$0xff]
      %v227 = vld [vmem:[%s166 + $0x1a8] sm:$0xff]
      %v228 = vld [vmem:[%s166 + $0x1b0] sm:$0xff]
      %v229 = vld [vmem:[%s166 + $0x1b8] sm:$0xff]
      %v230 = vld [vmem:[%s166 + $0x1c0] sm:$0xff]
      %v231 = vld [vmem:[%s166 + $0x1c8] sm:$0xff]
      %v232 = vld [vmem:[%s166 + $0x1d0] sm:$0xff]
      %v233 = vld [vmem:[%s166 + $0x1d8] sm:$0xff]
      %v234 = vld [vmem:[%s166 + $0x1e0] sm:$0xff]
      %v235 = vld [vmem:[%s166 + $0x1e8] sm:$0xff]
      %v236 = vld [vmem:[%s166 + $0x1f0] sm:$0xff]
      %v237 = vld [vmem:[%s166 + $0x1f8] sm:$0xff]
      %v238 = vld [vmem:[%s1] sm:$0xff]
      %240 = vset.pattern.permute.xlu0 0
      %241 = vperm.xlu0 %240, %v174
      %v242 = vpop.permute.xlu0 %241
      %245 = vset.pattern.permute.xlu0 0
      %246 = vperm.xlu0 %245, %v175
      %v247 = vpop.permute.xlu0 %246
      %250 = vset.pattern.permute.xlu0 0
      %251 = vperm.xlu0 %250, %v176
      %v252 = vpop.permute.xlu0 %251
      %255 = vset.pattern.permute.xlu0 0
      %256 = vperm.xlu0 %255, %v177
      %v257 = vpop.permute.xlu0 %256
      %260 = vset.pattern.permute.xlu0 0
      %261 = vperm.xlu0 %260, %v178
      %v262 = vpop.permute.xlu0 %261
      %265 = vset.pattern.permute.xlu0 0
      %266 = vperm.xlu0 %265, %v179
      %v267 = vpop.permute.xlu0 %266
      %270 = vset.pattern.permute.xlu0 0
      %271 = vperm.xlu0 %270, %v180
      %v272 = vpop.permute.xlu0 %271
      %275 = vset.pattern.permute.xlu0 0
      %276 = vperm.xlu0 %275, %v181
      %v277 = vpop.permute.xlu0 %276
      %280 = vset.pattern.permute.xlu0 0
      %281 = vperm.xlu0 %280, %v182
      %v282 = vpop.permute.xlu0 %281
      %285 = vset.pattern.permute.xlu0 0
      %286 = vperm.xlu0 %285, %v183
      %v287 = vpop.permute.xlu0 %286
      %290 = vset.pattern.permute.xlu0 0
      %291 = vperm.xlu0 %290, %v184
      %v292 = vpop.permute.xlu0 %291
      %295 = vset.pattern.permute.xlu0 0
      %296 = vperm.xlu0 %295, %v185
      %v297 = vpop.permute.xlu0 %296
      %300 = vset.pattern.permute.xlu0 0
      %301 = vperm.xlu0 %300, %v186
      %v302 = vpop.permute.xlu0 %301
      %305 = vset.pattern.permute.xlu0 0
      %306 = vperm.xlu0 %305, %v187
      %v307 = vpop.permute.xlu0 %306
      %310 = vset.pattern.permute.xlu0 0
      %311 = vperm.xlu0 %310, %v188
      %v312 = vpop.permute.xlu0 %311
      %315 = vset.pattern.permute.xlu0 0
      %316 = vperm.xlu0 %315, %v189
      %v317 = vpop.permute.xlu0 %316
      %320 = vset.pattern.permute.xlu0 0
      %321 = vperm.xlu0 %320, %v190
      %v322 = vpop.permute.xlu0 %321
      %325 = vset.pattern.permute.xlu0 0
      %326 = vperm.xlu0 %325, %v191
      %v327 = vpop.permute.xlu0 %326
      %330 = vset.pattern.permute.xlu0 0
      %331 = vperm.xlu0 %330, %v192
      %v332 = vpop.permute.xlu0 %331
      %335 = vset.pattern.permute.xlu0 0
      %336 = vperm.xlu0 %335, %v193
      %v337 = vpop.permute.xlu0 %336
      %340 = vset.pattern.permute.xlu0 0
      %341 = vperm.xlu0 %340, %v194
      %v342 = vpop.permute.xlu0 %341
      %345 = vset.pattern.permute.xlu0 0
      %346 = vperm.xlu0 %345, %v195
      %v347 = vpop.permute.xlu0 %346
      %350 = vset.pattern.permute.xlu0 0
      %351 = vperm.xlu0 %350, %v196
      %v352 = vpop.permute.xlu0 %351
      %355 = vset.pattern.permute.xlu0 0
      %356 = vperm.xlu0 %355, %v197
      %v357 = vpop.permute.xlu0 %356
      %360 = vset.pattern.permute.xlu0 0
      %361 = vperm.xlu0 %360, %v198
      %v362 = vpop.permute.xlu0 %361
      %365 = vset.pattern.permute.xlu0 0
      %366 = vperm.xlu0 %365, %v199
      %v367 = vpop.permute.xlu0 %366
      %370 = vset.pattern.permute.xlu0 0
      %371 = vperm.xlu0 %370, %v200
      %v372 = vpop.permute.xlu0 %371
      %375 = vset.pattern.permute.xlu0 0
      %376 = vperm.xlu0 %375, %v201
      %v377 = vpop.permute.xlu0 %376
      %380 = vset.pattern.permute.xlu0 0
      %381 = vperm.xlu0 %380, %v202
      %v382 = vpop.permute.xlu0 %381
      %385 = vset.pattern.permute.xlu0 0
      %386 = vperm.xlu0 %385, %v203
      %v387 = vpop.permute.xlu0 %386
      %390 = vset.pattern.permute.xlu0 0
      %391 = vperm.xlu0 %390, %v204
      %v392 = vpop.permute.xlu0 %391
      %395 = vset.pattern.permute.xlu0 0
      %396 = vperm.xlu0 %395, %v205
      %v397 = vpop.permute.xlu0 %396
      %400 = vset.pattern.permute.xlu0 0
      %401 = vperm.xlu0 %400, %v206
      %v402 = vpop.permute.xlu0 %401
      %405 = vset.pattern.permute.xlu0 0
      %406 = vperm.xlu0 %405, %v207
      %v407 = vpop.permute.xlu0 %406
      %410 = vset.pattern.permute.xlu0 0
      %411 = vperm.xlu0 %410, %v208
      %v412 = vpop.permute.xlu0 %411
      %415 = vset.pattern.permute.xlu0 0
      %416 = vperm.xlu0 %415, %v209
      %v417 = vpop.permute.xlu0 %416
      %420 = vset.pattern.permute.xlu0 0
      %421 = vperm.xlu0 %420, %v210
      %v422 = vpop.permute.xlu0 %421
      %425 = vset.pattern.permute.xlu0 0
      %426 = vperm.xlu0 %425, %v211
      %v427 = vpop.permute.xlu0 %426
      %430 = vset.pattern.permute.xlu0 0
      %431 = vperm.xlu0 %430, %v212
      %v432 = vpop.permute.xlu0 %431
      %435 = vset.pattern.permute.xlu0 0
      %436 = vperm.xlu0 %435, %v213
      %v437 = vpop.permute.xlu0 %436
      %440 = vset.pattern.permute.xlu0 0
      %441 = vperm.xlu0 %440, %v214
      %v442 = vpop.permute.xlu0 %441
      %445 = vset.pattern.permute.xlu0 0
      %446 = vperm.xlu0 %445, %v215
      %v447 = vpop.permute.xlu0 %446
      %450 = vset.pattern.permute.xlu0 0
      %451 = vperm.xlu0 %450, %v216
      %v452 = vpop.permute.xlu0 %451
      %455 = vset.pattern.permute.xlu0 0
      %456 = vperm.xlu0 %455, %v217
      %v457 = vpop.permute.xlu0 %456
      %460 = vset.pattern.permute.xlu0 0
      %461 = vperm.xlu0 %460, %v218
      %v462 = vpop.permute.xlu0 %461
      %465 = vset.pattern.permute.xlu0 0
      %466 = vperm.xlu0 %465, %v219
      %v467 = vpop.permute.xlu0 %466
      %470 = vset.pattern.permute.xlu0 0
      %471 = vperm.xlu0 %470, %v220
      %v472 = vpop.permute.xlu0 %471
      %475 = vset.pattern.permute.xlu0 0
      %476 = vperm.xlu0 %475, %v221
      %v477 = vpop.permute.xlu0 %476
      %480 = vset.pattern.permute.xlu0 0
      %481 = vperm.xlu0 %480, %v222
      %v482 = vpop.permute.xlu0 %481
      %485 = vset.pattern.permute.xlu0 0
      %486 = vperm.xlu0 %485, %v223
      %v487 = vpop.permute.xlu0 %486
      %490 = vset.pattern.permute.xlu0 0
      %491 = vperm.xlu0 %490, %v224
      %v492 = vpop.permute.xlu0 %491
      %495 = vset.pattern.permute.xlu0 0
      %496 = vperm.xlu0 %495, %v225
      %v497 = vpop.permute.xlu0 %496
      %500 = vset.pattern.permute.xlu0 0
      %501 = vperm.xlu0 %500, %v226
      %v502 = vpop.permute.xlu0 %501
      %505 = vset.pattern.permute.xlu0 0
      %506 = vperm.xlu0 %505, %v227
      %v507 = vpop.permute.xlu0 %506
      %510 = vset.pattern.permute.xlu0 0
      %511 = vperm.xlu0 %510, %v228
      %v512 = vpop.permute.xlu0 %511
      %515 = vset.pattern.permute.xlu0 0
      %516 = vperm.xlu0 %515, %v229
      %v517 = vpop.permute.xlu0 %516
      %520 = vset.pattern.permute.xlu0 0
      %521 = vperm.xlu0 %520, %v230
      %v522 = vpop.permute.xlu0 %521
      %525 = vset.pattern.permute.xlu0 0
      %526 = vperm.xlu0 %525, %v231
      %v527 = vpop.permute.xlu0 %526
      %530 = vset.pattern.permute.xlu0 0
      %531 = vperm.xlu0 %530, %v232
      %v532 = vpop.permute.xlu0 %531
      %535 = vset.pattern.permute.xlu0 0
      %536 = vperm.xlu0 %535, %v233
      %v537 = vpop.permute.xlu0 %536
      %540 = vset.pattern.permute.xlu0 0
      %541 = vperm.xlu0 %540, %v234
      %v542 = vpop.permute.xlu0 %541
      %545 = vset.pattern.permute.xlu0 0
      %546 = vperm.xlu0 %545, %v235
      %v547 = vpop.permute.xlu0 %546
      %550 = vset.pattern.permute.xlu0 0
      %551 = vperm.xlu0 %550, %v236
      %v552 = vpop.permute.xlu0 %551
      %555 = vset.pattern.permute.xlu0 0
      %556 = vperm.xlu0 %555, %v237
      %v557 = vpop.permute.xlu0 %556
      %v559 = vperm.slane %v238, 0
      %v560 = vmul.f32 %v242, %v559
      %v561 = vmul.f32 %v247, %v559
      %v562 = vmul.f32 %v252, %v559
      %v563 = vmul.f32 %v257, %v559
      %v564 = vmul.f32 %v262, %v559
      %v565 = vmul.f32 %v267, %v559
      %v566 = vmul.f32 %v272, %v559
      %v567 = vmul.f32 %v277, %v559
      %v568 = vmul.f32 %v282, %v559
      %v569 = vmul.f32 %v287, %v559
      %v570 = vmul.f32 %v292, %v559
      %v571 = vmul.f32 %v297, %v559
      %v572 = vmul.f32 %v302, %v559
      %v573 = vmul.f32 %v307, %v559
      %v574 = vmul.f32 %v312, %v559
      %v575 = vmul.f32 %v317, %v559
      %v576 = vmul.f32 %v322, %v559
      %v577 = vmul.f32 %v327, %v559
      %v578 = vmul.f32 %v332, %v559
      %v579 = vmul.f32 %v337, %v559
      %v580 = vmul.f32 %v342, %v559
      %v581 = vmul.f32 %v347, %v559
      %v582 = vmul.f32 %v352, %v559
      %v583 = vmul.f32 %v357, %v559
      %v584 = vmul.f32 %v362, %v559
      %v585 = vmul.f32 %v367, %v559
      %v586 = vmul.f32 %v372, %v559
      %v587 = vmul.f32 %v377, %v559
      %v588 = vmul.f32 %v382, %v559
      %v589 = vmul.f32 %v387, %v559
      %v590 = vmul.f32 %v392, %v559
      %v591 = vmul.f32 %v397, %v559
      %v592 = vmul.f32 %v402, %v559
      %v593 = vmul.f32 %v407, %v559
      %v594 = vmul.f32 %v412, %v559
      %v595 = vmul.f32 %v417, %v559
      %v596 = vmul.f32 %v422, %v559
      %v597 = vmul.f32 %v427, %v559
      %v598 = vmul.f32 %v432, %v559
      %v599 = vmul.f32 %v437, %v559
      %v600 = vmul.f32 %v442, %v559
      %v601 = vmul.f32 %v447, %v559
      %v602 = vmul.f32 %v452, %v559
      %v603 = vmul.f32 %v457, %v559
      %v604 = vmul.f32 %v462, %v559
      %v605 = vmul.f32 %v467, %v559
      %v606 = vmul.f32 %v472, %v559
      %v607 = vmul.f32 %v477, %v559
      %v608 = vmul.f32 %v482, %v559
      %v609 = vmul.f32 %v487, %v559
      %v610 = vmul.f32 %v492, %v559
      %v611 = vmul.f32 %v497, %v559
      %v612 = vmul.f32 %v502, %v559
      %v613 = vmul.f32 %v507, %v559
      %v614 = vmul.f32 %v512, %v559
      %v615 = vmul.f32 %v517, %v559
      %v616 = vmul.f32 %v522, %v559
      %v617 = vmul.f32 %v527, %v559
      %v618 = vmul.f32 %v532, %v559
      %v619 = vmul.f32 %v537, %v559
      %v620 = vmul.f32 %v542, %v559
      %v621 = vmul.f32 %v547, %v559
      %v622 = vmul.f32 %v552, %v559
      %v623 = vmul.f32 %v557, %v559
      %v624 = vld [vmem:[%s2] sm:$0x1]
      %v626 = vperm.slane %v624, 0
      %v628 = vadd.f32 %v560, %v626
      %v629 = vadd.f32 %v561, %v626
      %v630 = vadd.f32 %v562, %v626
      %v631 = vadd.f32 %v563, %v626
      %v632 = vadd.f32 %v564, %v626
      %v633 = vadd.f32 %v565, %v626
      %v634 = vadd.f32 %v566, %v626
      %v635 = vadd.f32 %v567, %v626
      %v636 = vadd.f32 %v568, %v626
      %v637 = vadd.f32 %v569, %v626
      %v638 = vadd.f32 %v570, %v626
      %v639 = vadd.f32 %v571, %v626
      %v640 = vadd.f32 %v572, %v626
      %v641 = vadd.f32 %v573, %v626
      %v642 = vadd.f32 %v574, %v626
      %v643 = vadd.f32 %v575, %v626
      %v644 = vadd.f32 %v576, %v626
      %v645 = vadd.f32 %v577, %v626
      %v646 = vadd.f32 %v578, %v626
      %v647 = vadd.f32 %v579, %v626
      %v648 = vadd.f32 %v580, %v626
      %v649 = vadd.f32 %v581, %v626
      %v650 = vadd.f32 %v582, %v626
      %v651 = vadd.f32 %v583, %v626
      %v652 = vadd.f32 %v584, %v626
      %v653 = vadd.f32 %v585, %v626
      %v654 = vadd.f32 %v586, %v626
      %v655 = vadd.f32 %v587, %v626
      %v656 = vadd.f32 %v588, %v626
      %v657 = vadd.f32 %v589, %v626
      %v658 = vadd.f32 %v590, %v626
      %v659 = vadd.f32 %v591, %v626
      %v660 = vadd.f32 %v592, %v626
      %v661 = vadd.f32 %v593, %v626
      %v662 = vadd.f32 %v594, %v626
      %v663 = vadd.f32 %v595, %v626
      %v664 = vadd.f32 %v596, %v626
      %v665 = vadd.f32 %v597, %v626
      %v666 = vadd.f32 %v598, %v626
      %v667 = vadd.f32 %v599, %v626
      %v668 = vadd.f32 %v600, %v626
      %v669 = vadd.f32 %v601, %v626
      %v670 = vadd.f32 %v602, %v626
      %v671 = vadd.f32 %v603, %v626
      %v672 = vadd.f32 %v604, %v626
      %v673 = vadd.f32 %v605, %v626
      %v674 = vadd.f32 %v606, %v626
      %v675 = vadd.f32 %v607, %v626
      %v676 = vadd.f32 %v608, %v626
      %v677 = vadd.f32 %v609, %v626
      %v678 = vadd.f32 %v610, %v626
      %v679 = vadd.f32 %v611, %v626
      %v680 = vadd.f32 %v612, %v626
      %v681 = vadd.f32 %v613, %v626
      %v682 = vadd.f32 %v614, %v626
      %v683 = vadd.f32 %v615, %v626
      %v684 = vadd.f32 %v616, %v626
      %v685 = vadd.f32 %v617, %v626
      %v686 = vadd.f32 %v618, %v626
      %v687 = vadd.f32 %v619, %v626
      %v688 = vadd.f32 %v620, %v626
      %v689 = vadd.f32 %v621, %v626
      %v690 = vadd.f32 %v622, %v626
      %v691 = vadd.f32 %v623, %v626
      %v692 = vtanh.pop %v628
      %v693 = vtanh.pop %v629
      %v694 = vtanh.pop %v630
      %v695 = vtanh.pop %v631
      %v696 = vtanh.pop %v632
      %v697 = vtanh.pop %v633
      %v698 = vtanh.pop %v634
      %v699 = vtanh.pop %v635
      %v700 = vtanh.pop %v636
      %v701 = vtanh.pop %v637
      %v702 = vtanh.pop %v638
      %v703 = vtanh.pop %v639
      %v704 = vtanh.pop %v640
      %v705 = vtanh.pop %v641
      %v706 = vtanh.pop %v642
      %v707 = vtanh.pop %v643
      %v708 = vtanh.pop %v644
      %v709 = vtanh.pop %v645
      %v710 = vtanh.pop %v646
      %v711 = vtanh.pop %v647
      %v712 = vtanh.pop %v648
      %v713 = vtanh.pop %v649
      %v714 = vtanh.pop %v650
      %v715 = vtanh.pop %v651
      %v716 = vtanh.pop %v652
      %v717 = vtanh.pop %v653
      %v718 = vtanh.pop %v654
      %v719 = vtanh.pop %v655
      %v720 = vtanh.pop %v656
      %v721 = vtanh.pop %v657
      %v722 = vtanh.pop %v658
      %v723 = vtanh.pop %v659
      %v724 = vtanh.pop %v660
      %v725 = vtanh.pop %v661
      %v726 = vtanh.pop %v662
      %v727 = vtanh.pop %v663
      %v728 = vtanh.pop %v664
      %v729 = vtanh.pop %v665
      %v730 = vtanh.pop %v666
      %v731 = vtanh.pop %v667
      %v732 = vtanh.pop %v668
      %v733 = vtanh.pop %v669
      %v734 = vtanh.pop %v670
      %v735 = vtanh.pop %v671
      %v736 = vtanh.pop %v672
      %v737 = vtanh.pop %v673
      %v738 = vtanh.pop %v674
      %v739 = vtanh.pop %v675
      %v740 = vtanh.pop %v676
      %v741 = vtanh.pop %v677
      %v742 = vtanh.pop %v678
      %v743 = vtanh.pop %v679
      %v744 = vtanh.pop %v680
      %v745 = vtanh.pop %v681
      %v746 = vtanh.pop %v682
      %v747 = vtanh.pop %v683
      %v748 = vtanh.pop %v684
      %v749 = vtanh.pop %v685
      %v750 = vtanh.pop %v686
      %v751 = vtanh.pop %v687
      %v752 = vtanh.pop %v688
      %v753 = vtanh.pop %v689
      %v754 = vtanh.pop %v690
      %v755 = vtanh.pop %v691
      %s756 = scalar_lea.vmem %s1, 128
      %v757 = vld [vmem:[%s756] sm:$0xff]
      %v758 = vld [vmem:[%s756 + $0x8] sm:$0xff]
      %v759 = vld [vmem:[%s756 + $0x10] sm:$0xff]
      %v760 = vld [vmem:[%s756 + $0x18] sm:$0xff]
      %v761 = vld [vmem:[%s756 + $0x20] sm:$0xff]
      %v762 = vld [vmem:[%s756 + $0x28] sm:$0xff]
      %v763 = vld [vmem:[%s756 + $0x30] sm:$0xff]
      %v764 = vld [vmem:[%s756 + $0x38] sm:$0xff]
      %v765 = vld [vmem:[%s756 + $0x40] sm:$0xff]
      %v766 = vld [vmem:[%s756 + $0x48] sm:$0xff]
      %v767 = vld [vmem:[%s756 + $0x50] sm:$0xff]
      %v768 = vld [vmem:[%s756 + $0x58] sm:$0xff]
      %v769 = vld [vmem:[%s756 + $0x60] sm:$0xff]
      %v770 = vld [vmem:[%s756 + $0x68] sm:$0xff]
      %v771 = vld [vmem:[%s756 + $0x70] sm:$0xff]
      %v772 = vld [vmem:[%s756 + $0x78] sm:$0xff]
      %s773 = scalar_lea.vmem %s2, 1
      %v774 = vld [vmem:[%s773] sm:$0x1]
      %v776 = vperm.slane %v774, 0
      %778 = vmatpush.msra.mxu0 %v772
      %779 = vmatpush.msra.mxu0 %v771
      %780 = vmatpush.msra.mxu0 %v770
      %781 = vmatpush.msra.mxu0 %v769
      %782 = vmatpush.msra.mxu0 %v768
      %783 = vmatpush.msra.mxu0 %v767
      %784 = vmatpush.msra.mxu0 %v766
      %785 = vmatpush.msra.mxu0 %v765
      %786 = vmatpush.msra.mxu0 %v764
      %787 = vmatpush.msra.mxu0 %v763
      %788 = vmatpush.msra.mxu0 %v762
      %789 = vmatpush.msra.mxu0 %v761
      %790 = vmatpush.msra.mxu0 %v760
      %791 = vmatpush.msra.mxu0 %v759
      %792 = vmatpush.msra.mxu0 %v758
      %793 = vmatpush.msra.mxu0 %v757
      %794 = vmatmul.f32.gmra.mxu0 %v692
      %v795 = vpop.f32.mrf.mxu0
      %v796 = vadd.f32 %v776, %v795
      %797 = vmatmul.f32.gmra.mxu0 %v693
      %v798 = vpop.f32.mrf.mxu0
      %v799 = vadd.f32 %v776, %v798
      %800 = vmatmul.f32.gmra.mxu0 %v694
      %v801 = vpop.f32.mrf.mxu0
      %v802 = vadd.f32 %v776, %v801
      %803 = vmatmul.f32.gmra.mxu0 %v695
      %v804 = vpop.f32.mrf.mxu0
      %v805 = vadd.f32 %v776, %v804
      %806 = vmatmul.f32.gmra.mxu0 %v696
      %v807 = vpop.f32.mrf.mxu0
      %v808 = vadd.f32 %v776, %v807
      %809 = vmatmul.f32.gmra.mxu0 %v697
      %v810 = vpop.f32.mrf.mxu0
      %v811 = vadd.f32 %v776, %v810
      %812 = vmatmul.f32.gmra.mxu0 %v698
      %v813 = vpop.f32.mrf.mxu0
      %v814 = vadd.f32 %v776, %v813
      %815 = vmatmul.f32.gmra.mxu0 %v699
      %v816 = vpop.f32.mrf.mxu0
      %v817 = vadd.f32 %v776, %v816
      %818 = vmatmul.f32.gmra.mxu0 %v700
      %v819 = vpop.f32.mrf.mxu0
      %v820 = vadd.f32 %v776, %v819
      %821 = vmatmul.f32.gmra.mxu0 %v701
      %v822 = vpop.f32.mrf.mxu0
      %v823 = vadd.f32 %v776, %v822
      %824 = vmatmul.f32.gmra.mxu0 %v702
      %v825 = vpop.f32.mrf.mxu0
      %v826 = vadd.f32 %v776, %v825
      %827 = vmatmul.f32.gmra.mxu0 %v703
      %v828 = vpop.f32.mrf.mxu0
      %v829 = vadd.f32 %v776, %v828
      %830 = vmatmul.f32.gmra.mxu0 %v704
      %v831 = vpop.f32.mrf.mxu0
      %v832 = vadd.f32 %v776, %v831
      %833 = vmatmul.f32.gmra.mxu0 %v705
      %v834 = vpop.f32.mrf.mxu0
      %v835 = vadd.f32 %v776, %v834
      %836 = vmatmul.f32.gmra.mxu0 %v706
      %v837 = vpop.f32.mrf.mxu0
      %v838 = vadd.f32 %v776, %v837
      %839 = vmatmul.f32.gmra.mxu0 %v707
      %v840 = vpop.f32.mrf.mxu0
      %v841 = vadd.f32 %v776, %v840
      %842 = vmatmul.f32.gmra.mxu0 %v708
      %v843 = vpop.f32.mrf.mxu0
      %v844 = vadd.f32 %v776, %v843
      %845 = vmatmul.f32.gmra.mxu0 %v709
      %v846 = vpop.f32.mrf.mxu0
      %v847 = vadd.f32 %v776, %v846
      %848 = vmatmul.f32.gmra.mxu0 %v710
      %v849 = vpop.f32.mrf.mxu0
      %v850 = vadd.f32 %v776, %v849
      %851 = vmatmul.f32.gmra.mxu0 %v711
      %v852 = vpop.f32.mrf.mxu0
      %v853 = vadd.f32 %v776, %v852
      %854 = vmatmul.f32.gmra.mxu0 %v712
      %v855 = vpop.f32.mrf.mxu0
      %v856 = vadd.f32 %v776, %v855
      %857 = vmatmul.f32.gmra.mxu0 %v713
      %v858 = vpop.f32.mrf.mxu0
      %v859 = vadd.f32 %v776, %v858
      %860 = vmatmul.f32.gmra.mxu0 %v714
      %v861 = vpop.f32.mrf.mxu0
      %v862 = vadd.f32 %v776, %v861
      %863 = vmatmul.f32.gmra.mxu0 %v715
      %v864 = vpop.f32.mrf.mxu0
      %v865 = vadd.f32 %v776, %v864
      %866 = vmatmul.f32.gmra.mxu0 %v716
      %v867 = vpop.f32.mrf.mxu0
      %v868 = vadd.f32 %v776, %v867
      %869 = vmatmul.f32.gmra.mxu0 %v717
      %v870 = vpop.f32.mrf.mxu0
      %v871 = vadd.f32 %v776, %v870
      %872 = vmatmul.f32.gmra.mxu0 %v718
      %v873 = vpop.f32.mrf.mxu0
      %v874 = vadd.f32 %v776, %v873
      %875 = vmatmul.f32.gmra.mxu0 %v719
      %v876 = vpop.f32.mrf.mxu0
      %v877 = vadd.f32 %v776, %v876
      %878 = vmatmul.f32.gmra.mxu0 %v720
      %v879 = vpop.f32.mrf.mxu0
      %v880 = vadd.f32 %v776, %v879
      %881 = vmatmul.f32.gmra.mxu0 %v721
      %v882 = vpop.f32.mrf.mxu0
      %v883 = vadd.f32 %v776, %v882
      %884 = vmatmul.f32.gmra.mxu0 %v722
      %v885 = vpop.f32.mrf.mxu0
      %v886 = vadd.f32 %v776, %v885
      %887 = vmatmul.f32.gmra.mxu0 %v723
      %v888 = vpop.f32.mrf.mxu0
      %v889 = vadd.f32 %v776, %v888
      %890 = vmatmul.f32.gmra.mxu0 %v724
      %v891 = vpop.f32.mrf.mxu0
      %v892 = vadd.f32 %v776, %v891
      %893 = vmatmul.f32.gmra.mxu0 %v725
      %v894 = vpop.f32.mrf.mxu0
      %v895 = vadd.f32 %v776, %v894
      %896 = vmatmul.f32.gmra.mxu0 %v726
      %v897 = vpop.f32.mrf.mxu0
      %v898 = vadd.f32 %v776, %v897
      %899 = vmatmul.f32.gmra.mxu0 %v727
      %v900 = vpop.f32.mrf.mxu0
      %v901 = vadd.f32 %v776, %v900
      %902 = vmatmul.f32.gmra.mxu0 %v728
      %v903 = vpop.f32.mrf.mxu0
      %v904 = vadd.f32 %v776, %v903
      %905 = vmatmul.f32.gmra.mxu0 %v729
      %v906 = vpop.f32.mrf.mxu0
      %v907 = vadd.f32 %v776, %v906
      %908 = vmatmul.f32.gmra.mxu0 %v730
      %v909 = vpop.f32.mrf.mxu0
      %v910 = vadd.f32 %v776, %v909
      %911 = vmatmul.f32.gmra.mxu0 %v731
      %v912 = vpop.f32.mrf.mxu0
      %v913 = vadd.f32 %v776, %v912
      %914 = vmatmul.f32.gmra.mxu0 %v732
      %v915 = vpop.f32.mrf.mxu0
      %v916 = vadd.f32 %v776, %v915
      %917 = vmatmul.f32.gmra.mxu0 %v733
      %v918 = vpop.f32.mrf.mxu0
      %v919 = vadd.f32 %v776, %v918
      %920 = vmatmul.f32.gmra.mxu0 %v734
      %v921 = vpop.f32.mrf.mxu0
      %v922 = vadd.f32 %v776, %v921
      %923 = vmatmul.f32.gmra.mxu0 %v735
      %v924 = vpop.f32.mrf.mxu0
      %v925 = vadd.f32 %v776, %v924
      %926 = vmatmul.f32.gmra.mxu0 %v736
      %v927 = vpop.f32.mrf.mxu0
      %v928 = vadd.f32 %v776, %v927
      %929 = vmatmul.f32.gmra.mxu0 %v737
      %v930 = vpop.f32.mrf.mxu0
      %v931 = vadd.f32 %v776, %v930
      %932 = vmatmul.f32.gmra.mxu0 %v738
      %v933 = vpop.f32.mrf.mxu0
      %v934 = vadd.f32 %v776, %v933
      %935 = vmatmul.f32.gmra.mxu0 %v739
      %v936 = vpop.f32.mrf.mxu0
      %v937 = vadd.f32 %v776, %v936
      %938 = vmatmul.f32.gmra.mxu0 %v740
      %v939 = vpop.f32.mrf.mxu0
      %v940 = vadd.f32 %v776, %v939
      %941 = vmatmul.f32.gmra.mxu0 %v741
      %v942 = vpop.f32.mrf.mxu0
      %v943 = vadd.f32 %v776, %v942
      %944 = vmatmul.f32.gmra.mxu0 %v742
      %v945 = vpop.f32.mrf.mxu0
      %v946 = vadd.f32 %v776, %v945
      %947 = vmatmul.f32.gmra.mxu0 %v743
      %v948 = vpop.f32.mrf.mxu0
      %v949 = vadd.f32 %v776, %v948
      %950 = vmatmul.f32.gmra.mxu0 %v744
      %v951 = vpop.f32.mrf.mxu0
      %v952 = vadd.f32 %v776, %v951
      %953 = vmatmul.f32.gmra.mxu0 %v745
      %v954 = vpop.f32.mrf.mxu0
      %v955 = vadd.f32 %v776, %v954
      %956 = vmatmul.f32.gmra.mxu0 %v746
      %v957 = vpop.f32.mrf.mxu0
      %v958 = vadd.f32 %v776, %v957
      %959 = vmatmul.f32.gmra.mxu0 %v747
      %v960 = vpop.f32.mrf.mxu0
      %v961 = vadd.f32 %v776, %v960
      %962 = vmatmul.f32.gmra.mxu0 %v748
      %v963 = vpop.f32.mrf.mxu0
      %v964 = vadd.f32 %v776, %v963
      %965 = vmatmul.f32.gmra.mxu0 %v749
      %v966 = vpop.f32.mrf.mxu0
      %v967 = vadd.f32 %v776, %v966
      %968 = vmatmul.f32.gmra.mxu0 %v750
      %v969 = vpop.f32.mrf.mxu0
      %v970 = vadd.f32 %v776, %v969
      %971 = vmatmul.f32.gmra.mxu0 %v751
      %v972 = vpop.f32.mrf.mxu0
      %v973 = vadd.f32 %v776, %v972
      %974 = vmatmul.f32.gmra.mxu0 %v752
      %v975 = vpop.f32.mrf.mxu0
      %v976 = vadd.f32 %v776, %v975
      %977 = vmatmul.f32.gmra.mxu0 %v753
      %v978 = vpop.f32.mrf.mxu0
      %v979 = vadd.f32 %v776, %v978
      %980 = vmatmul.f32.gmra.mxu0 %v754
      %v981 = vpop.f32.mrf.mxu0
      %v982 = vadd.f32 %v776, %v981
      %983 = vmatmul.f32.gmra.mxu0 %v755
      %v984 = vpop.f32.mrf.mxu0
      %v985 = vadd.f32 %v776, %v984
      %986 = vdwg.mxu0
      %v987 = vtanh.pop %v796
      %v988 = vtanh.pop %v799
      %v989 = vtanh.pop %v802
      %v990 = vtanh.pop %v805
      %v991 = vtanh.pop %v808
      %v992 = vtanh.pop %v811
      %v993 = vtanh.pop %v814
      %v994 = vtanh.pop %v817
      %v995 = vtanh.pop %v820
      %v996 = vtanh.pop %v823
      %v997 = vtanh.pop %v826
      %v998 = vtanh.pop %v829
      %v999 = vtanh.pop %v832
      %v1000 = vtanh.pop %v835
      %v1001 = vtanh.pop %v838
      %v1002 = vtanh.pop %v841
      %v1003 = vtanh.pop %v844
      %v1004 = vtanh.pop %v847
      %v1005 = vtanh.pop %v850
      %v1006 = vtanh.pop %v853
      %v1007 = vtanh.pop %v856
      %v1008 = vtanh.pop %v859
      %v1009 = vtanh.pop %v862
      %v1010 = vtanh.pop %v865
      %v1011 = vtanh.pop %v868
      %v1012 = vtanh.pop %v871
      %v1013 = vtanh.pop %v874
      %v1014 = vtanh.pop %v877
      %v1015 = vtanh.pop %v880
      %v1016 = vtanh.pop %v883
      %v1017 = vtanh.pop %v886
      %v1018 = vtanh.pop %v889
      %v1019 = vtanh.pop %v892
      %v1020 = vtanh.pop %v895
      %v1021 = vtanh.pop %v898
      %v1022 = vtanh.pop %v901
      %v1023 = vtanh.pop %v904
      %v1024 = vtanh.pop %v907
      %v1025 = vtanh.pop %v910
      %v1026 = vtanh.pop %v913
      %v1027 = vtanh.pop %v916
      %v1028 = vtanh.pop %v919
      %v1029 = vtanh.pop %v922
      %v1030 = vtanh.pop %v925
      %v1031 = vtanh.pop %v928
      %v1032 = vtanh.pop %v931
      %v1033 = vtanh.pop %v934
      %v1034 = vtanh.pop %v937
      %v1035 = vtanh.pop %v940
      %v1036 = vtanh.pop %v943
      %v1037 = vtanh.pop %v946
      %v1038 = vtanh.pop %v949
      %v1039 = vtanh.pop %v952
      %v1040 = vtanh.pop %v955
      %v1041 = vtanh.pop %v958
      %v1042 = vtanh.pop %v961
      %v1043 = vtanh.pop %v964
      %v1044 = vtanh.pop %v967
      %v1045 = vtanh.pop %v970
      %v1046 = vtanh.pop %v973
      %v1047 = vtanh.pop %v976
      %v1048 = vtanh.pop %v979
      %v1049 = vtanh.pop %v982
      %v1050 = vtanh.pop %v985
      %s1051 = scalar_lea.vmem %s1, 256
      %v1052 = vld [vmem:[%s1051] sm:$0xff]
      %v1053 = vld [vmem:[%s1051 + $0x8] sm:$0xff]
      %v1054 = vld [vmem:[%s1051 + $0x10] sm:$0xff]
      %v1055 = vld [vmem:[%s1051 + $0x18] sm:$0xff]
      %v1056 = vld [vmem:[%s1051 + $0x20] sm:$0xff]
      %v1057 = vld [vmem:[%s1051 + $0x28] sm:$0xff]
      %v1058 = vld [vmem:[%s1051 + $0x30] sm:$0xff]
      %v1059 = vld [vmem:[%s1051 + $0x38] sm:$0xff]
      %v1060 = vld [vmem:[%s1051 + $0x40] sm:$0xff]
      %v1061 = vld [vmem:[%s1051 + $0x48] sm:$0xff]
      %v1062 = vld [vmem:[%s1051 + $0x50] sm:$0xff]
      %v1063 = vld [vmem:[%s1051 + $0x58] sm:$0xff]
      %v1064 = vld [vmem:[%s1051 + $0x60] sm:$0xff]
      %v1065 = vld [vmem:[%s1051 + $0x68] sm:$0xff]
      %v1066 = vld [vmem:[%s1051 + $0x70] sm:$0xff]
      %v1067 = vld [vmem:[%s1051 + $0x78] sm:$0xff]
      %s1068 = scalar_lea.vmem %s2, 2
      %v1069 = vld [vmem:[%s1068] sm:$0x1]
      %v1071 = vperm.slane %v1069, 0
      %1073 = vmatpush.msra.mxu0 %v1067
      %1074 = vmatpush.msra.mxu0 %v1066
      %1075 = vmatpush.msra.mxu0 %v1065
      %1076 = vmatpush.msra.mxu0 %v1064
      %1077 = vmatpush.msra.mxu0 %v1063
      %1078 = vmatpush.msra.mxu0 %v1062
      %1079 = vmatpush.msra.mxu0 %v1061
      %1080 = vmatpush.msra.mxu0 %v1060
      %1081 = vmatpush.msra.mxu0 %v1059
      %1082 = vmatpush.msra.mxu0 %v1058
      %1083 = vmatpush.msra.mxu0 %v1057
      %1084 = vmatpush.msra.mxu0 %v1056
      %1085 = vmatpush.msra.mxu0 %v1055
      %1086 = vmatpush.msra.mxu0 %v1054
      %1087 = vmatpush.msra.mxu0 %v1053
      %1088 = vmatpush.msra.mxu0 %v1052
      %1089 = vmatmul.f32.gmra.mxu0 %v987
      %v1090 = vpop.f32.mrf.mxu0
      %v1091 = vadd.f32 %v1071, %v1090
      %1092 = vmatmul.f32.gmra.mxu0 %v988
      %v1093 = vpop.f32.mrf.mxu0
      %v1094 = vadd.f32 %v1071, %v1093
      %1095 = vmatmul.f32.gmra.mxu0 %v989
      %v1096 = vpop.f32.mrf.mxu0
      %v1097 = vadd.f32 %v1071, %v1096
      %1098 = vmatmul.f32.gmra.mxu0 %v990
      %v1099 = vpop.f32.mrf.mxu0
      %v1100 = vadd.f32 %v1071, %v1099
      %1101 = vmatmul.f32.gmra.mxu0 %v991
      %v1102 = vpop.f32.mrf.mxu0
      %v1103 = vadd.f32 %v1071, %v1102
      %1104 = vmatmul.f32.gmra.mxu0 %v992
      %v1105 = vpop.f32.mrf.mxu0
      %v1106 = vadd.f32 %v1071, %v1105
      %1107 = vmatmul.f32.gmra.mxu0 %v993
      %v1108 = vpop.f32.mrf.mxu0
      %v1109 = vadd.f32 %v1071, %v1108
      %1110 = vmatmul.f32.gmra.mxu0 %v994
      %v1111 = vpop.f32.mrf.mxu0
      %v1112 = vadd.f32 %v1071, %v1111
      %1113 = vmatmul.f32.gmra.mxu0 %v995
      %v1114 = vpop.f32.mrf.mxu0
      %v1115 = vadd.f32 %v1071, %v1114
      %1116 = vmatmul.f32.gmra.mxu0 %v996
      %v1117 = vpop.f32.mrf.mxu0
      %v1118 = vadd.f32 %v1071, %v1117
      %1119 = vmatmul.f32.gmra.mxu0 %v997
      %v1120 = vpop.f32.mrf.mxu0
      %v1121 = vadd.f32 %v1071, %v1120
      %1122 = vmatmul.f32.gmra.mxu0 %v998
      %v1123 = vpop.f32.mrf.mxu0
      %v1124 = vadd.f32 %v1071, %v1123
      %1125 = vmatmul.f32.gmra.mxu0 %v999
      %v1126 = vpop.f32.mrf.mxu0
      %v1127 = vadd.f32 %v1071, %v1126
      %1128 = vmatmul.f32.gmra.mxu0 %v1000
      %v1129 = vpop.f32.mrf.mxu0
      %v1130 = vadd.f32 %v1071, %v1129
      %1131 = vmatmul.f32.gmra.mxu0 %v1001
      %v1132 = vpop.f32.mrf.mxu0
      %v1133 = vadd.f32 %v1071, %v1132
      %1134 = vmatmul.f32.gmra.mxu0 %v1002
      %v1135 = vpop.f32.mrf.mxu0
      %v1136 = vadd.f32 %v1071, %v1135
      %1137 = vmatmul.f32.gmra.mxu0 %v1003
      %v1138 = vpop.f32.mrf.mxu0
      %v1139 = vadd.f32 %v1071, %v1138
      %1140 = vmatmul.f32.gmra.mxu0 %v1004
      %v1141 = vpop.f32.mrf.mxu0
      %v1142 = vadd.f32 %v1071, %v1141
      %1143 = vmatmul.f32.gmra.mxu0 %v1005
      %v1144 = vpop.f32.mrf.mxu0
      %v1145 = vadd.f32 %v1071, %v1144
      %1146 = vmatmul.f32.gmra.mxu0 %v1006
      %v1147 = vpop.f32.mrf.mxu0
      %v1148 = vadd.f32 %v1071, %v1147
      %1149 = vmatmul.f32.gmra.mxu0 %v1007
      %v1150 = vpop.f32.mrf.mxu0
      %v1151 = vadd.f32 %v1071, %v1150
      %1152 = vmatmul.f32.gmra.mxu0 %v1008
      %v1153 = vpop.f32.mrf.mxu0
      %v1154 = vadd.f32 %v1071, %v1153
      %1155 = vmatmul.f32.gmra.mxu0 %v1009
      %v1156 = vpop.f32.mrf.mxu0
      %v1157 = vadd.f32 %v1071, %v1156
      %1158 = vmatmul.f32.gmra.mxu0 %v1010
      %v1159 = vpop.f32.mrf.mxu0
      %v1160 = vadd.f32 %v1071, %v1159
      %1161 = vmatmul.f32.gmra.mxu0 %v1011
      %v1162 = vpop.f32.mrf.mxu0
      %v1163 = vadd.f32 %v1071, %v1162
      %1164 = vmatmul.f32.gmra.mxu0 %v1012
      %v1165 = vpop.f32.mrf.mxu0
      %v1166 = vadd.f32 %v1071, %v1165
      %1167 = vmatmul.f32.gmra.mxu0 %v1013
      %v1168 = vpop.f32.mrf.mxu0
      %v1169 = vadd.f32 %v1071, %v1168
      %1170 = vmatmul.f32.gmra.mxu0 %v1014
      %v1171 = vpop.f32.mrf.mxu0
      %v1172 = vadd.f32 %v1071, %v1171
      %1173 = vmatmul.f32.gmra.mxu0 %v1015
      %v1174 = vpop.f32.mrf.mxu0
      %v1175 = vadd.f32 %v1071, %v1174
      %1176 = vmatmul.f32.gmra.mxu0 %v1016
      %v1177 = vpop.f32.mrf.mxu0
      %v1178 = vadd.f32 %v1071, %v1177
      %1179 = vmatmul.f32.gmra.mxu0 %v1017
      %v1180 = vpop.f32.mrf.mxu0
      %v1181 = vadd.f32 %v1071, %v1180
      %1182 = vmatmul.f32.gmra.mxu0 %v1018
      %v1183 = vpop.f32.mrf.mxu0
      %v1184 = vadd.f32 %v1071, %v1183
      %1185 = vmatmul.f32.gmra.mxu0 %v1019
      %v1186 = vpop.f32.mrf.mxu0
      %v1187 = vadd.f32 %v1071, %v1186
      %1188 = vmatmul.f32.gmra.mxu0 %v1020
      %v1189 = vpop.f32.mrf.mxu0
      %v1190 = vadd.f32 %v1071, %v1189
      %1191 = vmatmul.f32.gmra.mxu0 %v1021
      %v1192 = vpop.f32.mrf.mxu0
      %v1193 = vadd.f32 %v1071, %v1192
      %1194 = vmatmul.f32.gmra.mxu0 %v1022
      %v1195 = vpop.f32.mrf.mxu0
      %v1196 = vadd.f32 %v1071, %v1195
      %1197 = vmatmul.f32.gmra.mxu0 %v1023
      %v1198 = vpop.f32.mrf.mxu0
      %v1199 = vadd.f32 %v1071, %v1198
      %1200 = vmatmul.f32.gmra.mxu0 %v1024
      %v1201 = vpop.f32.mrf.mxu0
      %v1202 = vadd.f32 %v1071, %v1201
      %1203 = vmatmul.f32.gmra.mxu0 %v1025
      %v1204 = vpop.f32.mrf.mxu0
      %v1205 = vadd.f32 %v1071, %v1204
      %1206 = vmatmul.f32.gmra.mxu0 %v1026
      %v1207 = vpop.f32.mrf.mxu0
      %v1208 = vadd.f32 %v1071, %v1207
      %1209 = vmatmul.f32.gmra.mxu0 %v1027
      %v1210 = vpop.f32.mrf.mxu0
      %v1211 = vadd.f32 %v1071, %v1210
      %1212 = vmatmul.f32.gmra.mxu0 %v1028
      %v1213 = vpop.f32.mrf.mxu0
      %v1214 = vadd.f32 %v1071, %v1213
      %1215 = vmatmul.f32.gmra.mxu0 %v1029
      %v1216 = vpop.f32.mrf.mxu0
      %v1217 = vadd.f32 %v1071, %v1216
      %1218 = vmatmul.f32.gmra.mxu0 %v1030
      %v1219 = vpop.f32.mrf.mxu0
      %v1220 = vadd.f32 %v1071, %v1219
      %1221 = vmatmul.f32.gmra.mxu0 %v1031
      %v1222 = vpop.f32.mrf.mxu0
      %v1223 = vadd.f32 %v1071, %v1222
      %1224 = vmatmul.f32.gmra.mxu0 %v1032
      %v1225 = vpop.f32.mrf.mxu0
      %v1226 = vadd.f32 %v1071, %v1225
      %1227 = vmatmul.f32.gmra.mxu0 %v1033
      %v1228 = vpop.f32.mrf.mxu0
      %v1229 = vadd.f32 %v1071, %v1228
      %1230 = vmatmul.f32.gmra.mxu0 %v1034
      %v1231 = vpop.f32.mrf.mxu0
      %v1232 = vadd.f32 %v1071, %v1231
      %1233 = vmatmul.f32.gmra.mxu0 %v1035
      %v1234 = vpop.f32.mrf.mxu0
      %v1235 = vadd.f32 %v1071, %v1234
      %1236 = vmatmul.f32.gmra.mxu0 %v1036
      %v1237 = vpop.f32.mrf.mxu0
      %v1238 = vadd.f32 %v1071, %v1237
      %1239 = vmatmul.f32.gmra.mxu0 %v1037
      %v1240 = vpop.f32.mrf.mxu0
      %v1241 = vadd.f32 %v1071, %v1240
      %1242 = vmatmul.f32.gmra.mxu0 %v1038
      %v1243 = vpop.f32.mrf.mxu0
      %v1244 = vadd.f32 %v1071, %v1243
      %1245 = vmatmul.f32.gmra.mxu0 %v1039
      %v1246 = vpop.f32.mrf.mxu0
      %v1247 = vadd.f32 %v1071, %v1246
      %1248 = vmatmul.f32.gmra.mxu0 %v1040
      %v1249 = vpop.f32.mrf.mxu0
      %v1250 = vadd.f32 %v1071, %v1249
      %1251 = vmatmul.f32.gmra.mxu0 %v1041
      %v1252 = vpop.f32.mrf.mxu0
      %v1253 = vadd.f32 %v1071, %v1252
      %1254 = vmatmul.f32.gmra.mxu0 %v1042
      %v1255 = vpop.f32.mrf.mxu0
      %v1256 = vadd.f32 %v1071, %v1255
      %1257 = vmatmul.f32.gmra.mxu0 %v1043
      %v1258 = vpop.f32.mrf.mxu0
      %v1259 = vadd.f32 %v1071, %v1258
      %1260 = vmatmul.f32.gmra.mxu0 %v1044
      %v1261 = vpop.f32.mrf.mxu0
      %v1262 = vadd.f32 %v1071, %v1261
      %1263 = vmatmul.f32.gmra.mxu0 %v1045
      %v1264 = vpop.f32.mrf.mxu0
      %v1265 = vadd.f32 %v1071, %v1264
      %1266 = vmatmul.f32.gmra.mxu0 %v1046
      %v1267 = vpop.f32.mrf.mxu0
      %v1268 = vadd.f32 %v1071, %v1267
      %1269 = vmatmul.f32.gmra.mxu0 %v1047
      %v1270 = vpop.f32.mrf.mxu0
      %v1271 = vadd.f32 %v1071, %v1270
      %1272 = vmatmul.f32.gmra.mxu0 %v1048
      %v1273 = vpop.f32.mrf.mxu0
      %v1274 = vadd.f32 %v1071, %v1273
      %1275 = vmatmul.f32.gmra.mxu0 %v1049
      %v1276 = vpop.f32.mrf.mxu0
      %v1277 = vadd.f32 %v1071, %v1276
      %1278 = vmatmul.f32.gmra.mxu0 %v1050
      %v1279 = vpop.f32.mrf.mxu0
      %v1280 = vadd.f32 %v1071, %v1279
      %1281 = vdwg.mxu0
      %v1282 = vtanh.pop %v1091
      %v1283 = vtanh.pop %v1094
      %v1284 = vtanh.pop %v1097
      %v1285 = vtanh.pop %v1100
      %v1286 = vtanh.pop %v1103
      %v1287 = vtanh.pop %v1106
      %v1288 = vtanh.pop %v1109
      %v1289 = vtanh.pop %v1112
      %v1290 = vtanh.pop %v1115
      %v1291 = vtanh.pop %v1118
      %v1292 = vtanh.pop %v1121
      %v1293 = vtanh.pop %v1124
      %v1294 = vtanh.pop %v1127
      %v1295 = vtanh.pop %v1130
      %v1296 = vtanh.pop %v1133
      %v1297 = vtanh.pop %v1136
      %v1298 = vtanh.pop %v1139
      %v1299 = vtanh.pop %v1142
      %v1300 = vtanh.pop %v1145
      %v1301 = vtanh.pop %v1148
      %v1302 = vtanh.pop %v1151
      %v1303 = vtanh.pop %v1154
      %v1304 = vtanh.pop %v1157
      %v1305 = vtanh.pop %v1160
      %v1306 = vtanh.pop %v1163
      %v1307 = vtanh.pop %v1166
      %v1308 = vtanh.pop %v1169
      %v1309 = vtanh.pop %v1172
      %v1310 = vtanh.pop %v1175
      %v1311 = vtanh.pop %v1178
      %v1312 = vtanh.pop %v1181
      %v1313 = vtanh.pop %v1184
      %v1314 = vtanh.pop %v1187
      %v1315 = vtanh.pop %v1190
      %v1316 = vtanh.pop %v1193
      %v1317 = vtanh.pop %v1196
      %v1318 = vtanh.pop %v1199
      %v1319 = vtanh.pop %v1202
      %v1320 = vtanh.pop %v1205
      %v1321 = vtanh.pop %v1208
      %v1322 = vtanh.pop %v1211
      %v1323 = vtanh.pop %v1214
      %v1324 = vtanh.pop %v1217
      %v1325 = vtanh.pop %v1220
      %v1326 = vtanh.pop %v1223
      %v1327 = vtanh.pop %v1226
      %v1328 = vtanh.pop %v1229
      %v1329 = vtanh.pop %v1232
      %v1330 = vtanh.pop %v1235
      %v1331 = vtanh.pop %v1238
      %v1332 = vtanh.pop %v1241
      %v1333 = vtanh.pop %v1244
      %v1334 = vtanh.pop %v1247
      %v1335 = vtanh.pop %v1250
      %v1336 = vtanh.pop %v1253
      %v1337 = vtanh.pop %v1256
      %v1338 = vtanh.pop %v1259
      %v1339 = vtanh.pop %v1262
      %v1340 = vtanh.pop %v1265
      %v1341 = vtanh.pop %v1268
      %v1342 = vtanh.pop %v1271
      %v1343 = vtanh.pop %v1274
      %v1344 = vtanh.pop %v1277
      %v1345 = vtanh.pop %v1280
      %s1346 = scalar_lea.vmem %s1, 384
      %v1347 = vld [vmem:[%s1346] sm:$0xff]
      %v1348 = vld [vmem:[%s1346 + $0x8] sm:$0xff]
      %v1349 = vld [vmem:[%s1346 + $0x10] sm:$0xff]
      %v1350 = vld [vmem:[%s1346 + $0x18] sm:$0xff]
      %v1351 = vld [vmem:[%s1346 + $0x20] sm:$0xff]
      %v1352 = vld [vmem:[%s1346 + $0x28] sm:$0xff]
      %v1353 = vld [vmem:[%s1346 + $0x30] sm:$0xff]
      %v1354 = vld [vmem:[%s1346 + $0x38] sm:$0xff]
      %v1355 = vld [vmem:[%s1346 + $0x40] sm:$0xff]
      %v1356 = vld [vmem:[%s1346 + $0x48] sm:$0xff]
      %v1357 = vld [vmem:[%s1346 + $0x50] sm:$0xff]
      %v1358 = vld [vmem:[%s1346 + $0x58] sm:$0xff]
      %v1359 = vld [vmem:[%s1346 + $0x60] sm:$0xff]
      %v1360 = vld [vmem:[%s1346 + $0x68] sm:$0xff]
      %v1361 = vld [vmem:[%s1346 + $0x70] sm:$0xff]
      %v1362 = vld [vmem:[%s1346 + $0x78] sm:$0xff]
      %s1363 = scalar_lea.vmem %s2, 3
      %v1364 = vld [vmem:[%s1363] sm:$0x1]
      %v1366 = vperm.slane %v1364, 0
      %1368 = vmatpush.msra.mxu0 %v1362
      %1369 = vmatpush.msra.mxu0 %v1361
      %1370 = vmatpush.msra.mxu0 %v1360
      %1371 = vmatpush.msra.mxu0 %v1359
      %1372 = vmatpush.msra.mxu0 %v1358
      %1373 = vmatpush.msra.mxu0 %v1357
      %1374 = vmatpush.msra.mxu0 %v1356
      %1375 = vmatpush.msra.mxu0 %v1355
      %1376 = vmatpush.msra.mxu0 %v1354
      %1377 = vmatpush.msra.mxu0 %v1353
      %1378 = vmatpush.msra.mxu0 %v1352
      %1379 = vmatpush.msra.mxu0 %v1351
      %1380 = vmatpush.msra.mxu0 %v1350
      %1381 = vmatpush.msra.mxu0 %v1349
      %1382 = vmatpush.msra.mxu0 %v1348
      %1383 = vmatpush.msra.mxu0 %v1347
      %1384 = vmatmul.f32.gmra.mxu0 %v1282
      %v1385 = vpop.f32.mrf.mxu0
      %v1386 = vadd.f32 %v1366, %v1385
      %1387 = vmatmul.f32.gmra.mxu0 %v1283
      %v1388 = vpop.f32.mrf.mxu0
      %v1389 = vadd.f32 %v1366, %v1388
      %1390 = vmatmul.f32.gmra.mxu0 %v1284
      %v1391 = vpop.f32.mrf.mxu0
      %v1392 = vadd.f32 %v1366, %v1391
      %1393 = vmatmul.f32.gmra.mxu0 %v1285
      %v1394 = vpop.f32.mrf.mxu0
      %v1395 = vadd.f32 %v1366, %v1394
      %1396 = vmatmul.f32.gmra.mxu0 %v1286
      %v1397 = vpop.f32.mrf.mxu0
      %v1398 = vadd.f32 %v1366, %v1397
      %1399 = vmatmul.f32.gmra.mxu0 %v1287
      %v1400 = vpop.f32.mrf.mxu0
      %v1401 = vadd.f32 %v1366, %v1400
      %1402 = vmatmul.f32.gmra.mxu0 %v1288
      %v1403 = vpop.f32.mrf.mxu0
      %v1404 = vadd.f32 %v1366, %v1403
      %1405 = vmatmul.f32.gmra.mxu0 %v1289
      %v1406 = vpop.f32.mrf.mxu0
      %v1407 = vadd.f32 %v1366, %v1406
      %1408 = vmatmul.f32.gmra.mxu0 %v1290
      %v1409 = vpop.f32.mrf.mxu0
      %v1410 = vadd.f32 %v1366, %v1409
      %1411 = vmatmul.f32.gmra.mxu0 %v1291
      %v1412 = vpop.f32.mrf.mxu0
      %v1413 = vadd.f32 %v1366, %v1412
      %1414 = vmatmul.f32.gmra.mxu0 %v1292
      %v1415 = vpop.f32.mrf.mxu0
      %v1416 = vadd.f32 %v1366, %v1415
      %1417 = vmatmul.f32.gmra.mxu0 %v1293
      %v1418 = vpop.f32.mrf.mxu0
      %v1419 = vadd.f32 %v1366, %v1418
      %1420 = vmatmul.f32.gmra.mxu0 %v1294
      %v1421 = vpop.f32.mrf.mxu0
      %v1422 = vadd.f32 %v1366, %v1421
      %1423 = vmatmul.f32.gmra.mxu0 %v1295
      %v1424 = vpop.f32.mrf.mxu0
      %v1425 = vadd.f32 %v1366, %v1424
      %1426 = vmatmul.f32.gmra.mxu0 %v1296
      %v1427 = vpop.f32.mrf.mxu0
      %v1428 = vadd.f32 %v1366, %v1427
      %1429 = vmatmul.f32.gmra.mxu0 %v1297
      %v1430 = vpop.f32.mrf.mxu0
      %v1431 = vadd.f32 %v1366, %v1430
      %1432 = vmatmul.f32.gmra.mxu0 %v1298
      %v1433 = vpop.f32.mrf.mxu0
      %v1434 = vadd.f32 %v1366, %v1433
      %1435 = vmatmul.f32.gmra.mxu0 %v1299
      %v1436 = vpop.f32.mrf.mxu0
      %v1437 = vadd.f32 %v1366, %v1436
      %1438 = vmatmul.f32.gmra.mxu0 %v1300
      %v1439 = vpop.f32.mrf.mxu0
      %v1440 = vadd.f32 %v1366, %v1439
      %1441 = vmatmul.f32.gmra.mxu0 %v1301
      %v1442 = vpop.f32.mrf.mxu0
      %v1443 = vadd.f32 %v1366, %v1442
      %1444 = vmatmul.f32.gmra.mxu0 %v1302
      %v1445 = vpop.f32.mrf.mxu0
      %v1446 = vadd.f32 %v1366, %v1445
      %1447 = vmatmul.f32.gmra.mxu0 %v1303
      %v1448 = vpop.f32.mrf.mxu0
      %v1449 = vadd.f32 %v1366, %v1448
      %1450 = vmatmul.f32.gmra.mxu0 %v1304
      %v1451 = vpop.f32.mrf.mxu0
      %v1452 = vadd.f32 %v1366, %v1451
      %1453 = vmatmul.f32.gmra.mxu0 %v1305
      %v1454 = vpop.f32.mrf.mxu0
      %v1455 = vadd.f32 %v1366, %v1454
      %1456 = vmatmul.f32.gmra.mxu0 %v1306
      %v1457 = vpop.f32.mrf.mxu0
      %v1458 = vadd.f32 %v1366, %v1457
      %1459 = vmatmul.f32.gmra.mxu0 %v1307
      %v1460 = vpop.f32.mrf.mxu0
      %v1461 = vadd.f32 %v1366, %v1460
      %1462 = vmatmul.f32.gmra.mxu0 %v1308
      %v1463 = vpop.f32.mrf.mxu0
      %v1464 = vadd.f32 %v1366, %v1463
      %1465 = vmatmul.f32.gmra.mxu0 %v1309
      %v1466 = vpop.f32.mrf.mxu0
      %v1467 = vadd.f32 %v1366, %v1466
      %1468 = vmatmul.f32.gmra.mxu0 %v1310
      %v1469 = vpop.f32.mrf.mxu0
      %v1470 = vadd.f32 %v1366, %v1469
      %1471 = vmatmul.f32.gmra.mxu0 %v1311
      %v1472 = vpop.f32.mrf.mxu0
      %v1473 = vadd.f32 %v1366, %v1472
      %1474 = vmatmul.f32.gmra.mxu0 %v1312
      %v1475 = vpop.f32.mrf.mxu0
      %v1476 = vadd.f32 %v1366, %v1475
      %1477 = vmatmul.f32.gmra.mxu0 %v1313
      %v1478 = vpop.f32.mrf.mxu0
      %v1479 = vadd.f32 %v1366, %v1478
      %1480 = vmatmul.f32.gmra.mxu0 %v1314
      %v1481 = vpop.f32.mrf.mxu0
      %v1482 = vadd.f32 %v1366, %v1481
      %1483 = vmatmul.f32.gmra.mxu0 %v1315
      %v1484 = vpop.f32.mrf.mxu0
      %v1485 = vadd.f32 %v1366, %v1484
      %1486 = vmatmul.f32.gmra.mxu0 %v1316
      %v1487 = vpop.f32.mrf.mxu0
      %v1488 = vadd.f32 %v1366, %v1487
      %1489 = vmatmul.f32.gmra.mxu0 %v1317
      %v1490 = vpop.f32.mrf.mxu0
      %v1491 = vadd.f32 %v1366, %v1490
      %1492 = vmatmul.f32.gmra.mxu0 %v1318
      %v1493 = vpop.f32.mrf.mxu0
      %v1494 = vadd.f32 %v1366, %v1493
      %1495 = vmatmul.f32.gmra.mxu0 %v1319
      %v1496 = vpop.f32.mrf.mxu0
      %v1497 = vadd.f32 %v1366, %v1496
      %1498 = vmatmul.f32.gmra.mxu0 %v1320
      %v1499 = vpop.f32.mrf.mxu0
      %v1500 = vadd.f32 %v1366, %v1499
      %1501 = vmatmul.f32.gmra.mxu0 %v1321
      %v1502 = vpop.f32.mrf.mxu0
      %v1503 = vadd.f32 %v1366, %v1502
      %1504 = vmatmul.f32.gmra.mxu0 %v1322
      %v1505 = vpop.f32.mrf.mxu0
      %v1506 = vadd.f32 %v1366, %v1505
      %1507 = vmatmul.f32.gmra.mxu0 %v1323
      %v1508 = vpop.f32.mrf.mxu0
      %v1509 = vadd.f32 %v1366, %v1508
      %1510 = vmatmul.f32.gmra.mxu0 %v1324
      %v1511 = vpop.f32.mrf.mxu0
      %v1512 = vadd.f32 %v1366, %v1511
      %1513 = vmatmul.f32.gmra.mxu0 %v1325
      %v1514 = vpop.f32.mrf.mxu0
      %v1515 = vadd.f32 %v1366, %v1514
      %1516 = vmatmul.f32.gmra.mxu0 %v1326
      %v1517 = vpop.f32.mrf.mxu0
      %v1518 = vadd.f32 %v1366, %v1517
      %1519 = vmatmul.f32.gmra.mxu0 %v1327
      %v1520 = vpop.f32.mrf.mxu0
      %v1521 = vadd.f32 %v1366, %v1520
      %1522 = vmatmul.f32.gmra.mxu0 %v1328
      %v1523 = vpop.f32.mrf.mxu0
      %v1524 = vadd.f32 %v1366, %v1523
      %1525 = vmatmul.f32.gmra.mxu0 %v1329
      %v1526 = vpop.f32.mrf.mxu0
      %v1527 = vadd.f32 %v1366, %v1526
      %1528 = vmatmul.f32.gmra.mxu0 %v1330
      %v1529 = vpop.f32.mrf.mxu0
      %v1530 = vadd.f32 %v1366, %v1529
      %1531 = vmatmul.f32.gmra.mxu0 %v1331
      %v1532 = vpop.f32.mrf.mxu0
      %v1533 = vadd.f32 %v1366, %v1532
      %1534 = vmatmul.f32.gmra.mxu0 %v1332
      %v1535 = vpop.f32.mrf.mxu0
      %v1536 = vadd.f32 %v1366, %v1535
      %1537 = vmatmul.f32.gmra.mxu0 %v1333
      %v1538 = vpop.f32.mrf.mxu0
      %v1539 = vadd.f32 %v1366, %v1538
      %1540 = vmatmul.f32.gmra.mxu0 %v1334
      %v1541 = vpop.f32.mrf.mxu0
      %v1542 = vadd.f32 %v1366, %v1541
      %1543 = vmatmul.f32.gmra.mxu0 %v1335
      %v1544 = vpop.f32.mrf.mxu0
      %v1545 = vadd.f32 %v1366, %v1544
      %1546 = vmatmul.f32.gmra.mxu0 %v1336
      %v1547 = vpop.f32.mrf.mxu0
      %v1548 = vadd.f32 %v1366, %v1547
      %1549 = vmatmul.f32.gmra.mxu0 %v1337
      %v1550 = vpop.f32.mrf.mxu0
      %v1551 = vadd.f32 %v1366, %v1550
      %1552 = vmatmul.f32.gmra.mxu0 %v1338
      %v1553 = vpop.f32.mrf.mxu0
      %v1554 = vadd.f32 %v1366, %v1553
      %1555 = vmatmul.f32.gmra.mxu0 %v1339
      %v1556 = vpop.f32.mrf.mxu0
      %v1557 = vadd.f32 %v1366, %v1556
      %1558 = vmatmul.f32.gmra.mxu0 %v1340
      %v1559 = vpop.f32.mrf.mxu0
      %v1560 = vadd.f32 %v1366, %v1559
      %1561 = vmatmul.f32.gmra.mxu0 %v1341
      %v1562 = vpop.f32.mrf.mxu0
      %v1563 = vadd.f32 %v1366, %v1562
      %1564 = vmatmul.f32.gmra.mxu0 %v1342
      %v1565 = vpop.f32.mrf.mxu0
      %v1566 = vadd.f32 %v1366, %v1565
      %1567 = vmatmul.f32.gmra.mxu0 %v1343
      %v1568 = vpop.f32.mrf.mxu0
      %v1569 = vadd.f32 %v1366, %v1568
      %1570 = vmatmul.f32.gmra.mxu0 %v1344
      %v1571 = vpop.f32.mrf.mxu0
      %v1572 = vadd.f32 %v1366, %v1571
      %1573 = vmatmul.f32.gmra.mxu0 %v1345
      %v1574 = vpop.f32.mrf.mxu0
      %v1575 = vadd.f32 %v1366, %v1574
      %1576 = vdwg.mxu0
      %v1577 = vtanh.pop %v1386
      %v1578 = vtanh.pop %v1389
      %v1579 = vtanh.pop %v1392
      %v1580 = vtanh.pop %v1395
      %v1581 = vtanh.pop %v1398
      %v1582 = vtanh.pop %v1401
      %v1583 = vtanh.pop %v1404
      %v1584 = vtanh.pop %v1407
      %v1585 = vtanh.pop %v1410
      %v1586 = vtanh.pop %v1413
      %v1587 = vtanh.pop %v1416
      %v1588 = vtanh.pop %v1419
      %v1589 = vtanh.pop %v1422
      %v1590 = vtanh.pop %v1425
      %v1591 = vtanh.pop %v1428
      %v1592 = vtanh.pop %v1431
      %v1593 = vtanh.pop %v1434
      %v1594 = vtanh.pop %v1437
      %v1595 = vtanh.pop %v1440
      %v1596 = vtanh.pop %v1443
      %v1597 = vtanh.pop %v1446
      %v1598 = vtanh.pop %v1449
      %v1599 = vtanh.pop %v1452
      %v1600 = vtanh.pop %v1455
      %v1601 = vtanh.pop %v1458
      %v1602 = vtanh.pop %v1461
      %v1603 = vtanh.pop %v1464
      %v1604 = vtanh.pop %v1467
      %v1605 = vtanh.pop %v1470
      %v1606 = vtanh.pop %v1473
      %v1607 = vtanh.pop %v1476
      %v1608 = vtanh.pop %v1479
      %v1609 = vtanh.pop %v1482
      %v1610 = vtanh.pop %v1485
      %v1611 = vtanh.pop %v1488
      %v1612 = vtanh.pop %v1491
      %v1613 = vtanh.pop %v1494
      %v1614 = vtanh.pop %v1497
      %v1615 = vtanh.pop %v1500
      %v1616 = vtanh.pop %v1503
      %v1617 = vtanh.pop %v1506
      %v1618 = vtanh.pop %v1509
      %v1619 = vtanh.pop %v1512
      %v1620 = vtanh.pop %v1515
      %v1621 = vtanh.pop %v1518
      %v1622 = vtanh.pop %v1521
      %v1623 = vtanh.pop %v1524
      %v1624 = vtanh.pop %v1527
      %v1625 = vtanh.pop %v1530
      %v1626 = vtanh.pop %v1533
      %v1627 = vtanh.pop %v1536
      %v1628 = vtanh.pop %v1539
      %v1629 = vtanh.pop %v1542
      %v1630 = vtanh.pop %v1545
      %v1631 = vtanh.pop %v1548
      %v1632 = vtanh.pop %v1551
      %v1633 = vtanh.pop %v1554
      %v1634 = vtanh.pop %v1557
      %v1635 = vtanh.pop %v1560
      %v1636 = vtanh.pop %v1563
      %v1637 = vtanh.pop %v1566
      %v1638 = vtanh.pop %v1569
      %v1639 = vtanh.pop %v1572
      %v1640 = vtanh.pop %v1575
      %s1641 = scalar_lea.vmem %s1, 512
      %v1642 = vld [vmem:[%s1641] sm:$0xff]
      %v1643 = vld [vmem:[%s1641 + $0x8] sm:$0xff]
      %v1644 = vld [vmem:[%s1641 + $0x10] sm:$0xff]
      %v1645 = vld [vmem:[%s1641 + $0x18] sm:$0xff]
      %v1646 = vld [vmem:[%s1641 + $0x20] sm:$0xff]
      %v1647 = vld [vmem:[%s1641 + $0x28] sm:$0xff]
      %v1648 = vld [vmem:[%s1641 + $0x30] sm:$0xff]
      %v1649 = vld [vmem:[%s1641 + $0x38] sm:$0xff]
      %v1650 = vld [vmem:[%s1641 + $0x40] sm:$0xff]
      %v1651 = vld [vmem:[%s1641 + $0x48] sm:$0xff]
      %v1652 = vld [vmem:[%s1641 + $0x50] sm:$0xff]
      %v1653 = vld [vmem:[%s1641 + $0x58] sm:$0xff]
      %v1654 = vld [vmem:[%s1641 + $0x60] sm:$0xff]
      %v1655 = vld [vmem:[%s1641 + $0x68] sm:$0xff]
      %v1656 = vld [vmem:[%s1641 + $0x70] sm:$0xff]
      %v1657 = vld [vmem:[%s1641 + $0x78] sm:$0xff]
      %s1658 = scalar_lea.vmem %s2, 4
      %v1659 = vld [vmem:[%s1658] sm:$0x1]
      %v1661 = vperm.slane %v1659, 0
      %1663 = vmatpush.msra.mxu0 %v1657
      %1664 = vmatpush.msra.mxu0 %v1656
      %1665 = vmatpush.msra.mxu0 %v1655
      %1666 = vmatpush.msra.mxu0 %v1654
      %1667 = vmatpush.msra.mxu0 %v1653
      %1668 = vmatpush.msra.mxu0 %v1652
      %1669 = vmatpush.msra.mxu0 %v1651
      %1670 = vmatpush.msra.mxu0 %v1650
      %1671 = vmatpush.msra.mxu0 %v1649
      %1672 = vmatpush.msra.mxu0 %v1648
      %1673 = vmatpush.msra.mxu0 %v1647
      %1674 = vmatpush.msra.mxu0 %v1646
      %1675 = vmatpush.msra.mxu0 %v1645
      %1676 = vmatpush.msra.mxu0 %v1644
      %1677 = vmatpush.msra.mxu0 %v1643
      %1678 = vmatpush.msra.mxu0 %v1642
      %1679 = vmatmul.f32.gmra.mxu0 %v1577
      %v1680 = vpop.f32.mrf.mxu0
      %v1681 = vadd.f32 %v1661, %v1680
      %1682 = vmatmul.f32.gmra.mxu0 %v1578
      %v1683 = vpop.f32.mrf.mxu0
      %v1684 = vadd.f32 %v1661, %v1683
      %1685 = vmatmul.f32.gmra.mxu0 %v1579
      %v1686 = vpop.f32.mrf.mxu0
      %v1687 = vadd.f32 %v1661, %v1686
      %1688 = vmatmul.f32.gmra.mxu0 %v1580
      %v1689 = vpop.f32.mrf.mxu0
      %v1690 = vadd.f32 %v1661, %v1689
      %1691 = vmatmul.f32.gmra.mxu0 %v1581
      %v1692 = vpop.f32.mrf.mxu0
      %v1693 = vadd.f32 %v1661, %v1692
      %1694 = vmatmul.f32.gmra.mxu0 %v1582
      %v1695 = vpop.f32.mrf.mxu0
      %v1696 = vadd.f32 %v1661, %v1695
      %1697 = vmatmul.f32.gmra.mxu0 %v1583
      %v1698 = vpop.f32.mrf.mxu0
      %v1699 = vadd.f32 %v1661, %v1698
      %1700 = vmatmul.f32.gmra.mxu0 %v1584
      %v1701 = vpop.f32.mrf.mxu0
      %v1702 = vadd.f32 %v1661, %v1701
      %1703 = vmatmul.f32.gmra.mxu0 %v1585
      %v1704 = vpop.f32.mrf.mxu0
      %v1705 = vadd.f32 %v1661, %v1704
      %1706 = vmatmul.f32.gmra.mxu0 %v1586
      %v1707 = vpop.f32.mrf.mxu0
      %v1708 = vadd.f32 %v1661, %v1707
      %1709 = vmatmul.f32.gmra.mxu0 %v1587
      %v1710 = vpop.f32.mrf.mxu0
      %v1711 = vadd.f32 %v1661, %v1710
      %1712 = vmatmul.f32.gmra.mxu0 %v1588
      %v1713 = vpop.f32.mrf.mxu0
      %v1714 = vadd.f32 %v1661, %v1713
      %1715 = vmatmul.f32.gmra.mxu0 %v1589
      %v1716 = vpop.f32.mrf.mxu0
      %v1717 = vadd.f32 %v1661, %v1716
      %1718 = vmatmul.f32.gmra.mxu0 %v1590
      %v1719 = vpop.f32.mrf.mxu0
      %v1720 = vadd.f32 %v1661, %v1719
      %1721 = vmatmul.f32.gmra.mxu0 %v1591
      %v1722 = vpop.f32.mrf.mxu0
      %v1723 = vadd.f32 %v1661, %v1722
      %1724 = vmatmul.f32.gmra.mxu0 %v1592
      %v1725 = vpop.f32.mrf.mxu0
      %v1726 = vadd.f32 %v1661, %v1725
      %1727 = vmatmul.f32.gmra.mxu0 %v1593
      %v1728 = vpop.f32.mrf.mxu0
      %v1729 = vadd.f32 %v1661, %v1728
      %1730 = vmatmul.f32.gmra.mxu0 %v1594
      %v1731 = vpop.f32.mrf.mxu0
      %v1732 = vadd.f32 %v1661, %v1731
      %1733 = vmatmul.f32.gmra.mxu0 %v1595
      %v1734 = vpop.f32.mrf.mxu0
      %v1735 = vadd.f32 %v1661, %v1734
      %1736 = vmatmul.f32.gmra.mxu0 %v1596
      %v1737 = vpop.f32.mrf.mxu0
      %v1738 = vadd.f32 %v1661, %v1737
      %1739 = vmatmul.f32.gmra.mxu0 %v1597
      %v1740 = vpop.f32.mrf.mxu0
      %v1741 = vadd.f32 %v1661, %v1740
      %1742 = vmatmul.f32.gmra.mxu0 %v1598
      %v1743 = vpop.f32.mrf.mxu0
      %v1744 = vadd.f32 %v1661, %v1743
      %1745 = vmatmul.f32.gmra.mxu0 %v1599
      %v1746 = vpop.f32.mrf.mxu0
      %v1747 = vadd.f32 %v1661, %v1746
      %1748 = vmatmul.f32.gmra.mxu0 %v1600
      %v1749 = vpop.f32.mrf.mxu0
      %v1750 = vadd.f32 %v1661, %v1749
      %1751 = vmatmul.f32.gmra.mxu0 %v1601
      %v1752 = vpop.f32.mrf.mxu0
      %v1753 = vadd.f32 %v1661, %v1752
      %1754 = vmatmul.f32.gmra.mxu0 %v1602
      %v1755 = vpop.f32.mrf.mxu0
      %v1756 = vadd.f32 %v1661, %v1755
      %1757 = vmatmul.f32.gmra.mxu0 %v1603
      %v1758 = vpop.f32.mrf.mxu0
      %v1759 = vadd.f32 %v1661, %v1758
      %1760 = vmatmul.f32.gmra.mxu0 %v1604
      %v1761 = vpop.f32.mrf.mxu0
      %v1762 = vadd.f32 %v1661, %v1761
      %1763 = vmatmul.f32.gmra.mxu0 %v1605
      %v1764 = vpop.f32.mrf.mxu0
      %v1765 = vadd.f32 %v1661, %v1764
      %1766 = vmatmul.f32.gmra.mxu0 %v1606
      %v1767 = vpop.f32.mrf.mxu0
      %v1768 = vadd.f32 %v1661, %v1767
      %1769 = vmatmul.f32.gmra.mxu0 %v1607
      %v1770 = vpop.f32.mrf.mxu0
      %v1771 = vadd.f32 %v1661, %v1770
      %1772 = vmatmul.f32.gmra.mxu0 %v1608
      %v1773 = vpop.f32.mrf.mxu0
      %v1774 = vadd.f32 %v1661, %v1773
      %1775 = vmatmul.f32.gmra.mxu0 %v1609
      %v1776 = vpop.f32.mrf.mxu0
      %v1777 = vadd.f32 %v1661, %v1776
      %1778 = vmatmul.f32.gmra.mxu0 %v1610
      %v1779 = vpop.f32.mrf.mxu0
      %v1780 = vadd.f32 %v1661, %v1779
      %1781 = vmatmul.f32.gmra.mxu0 %v1611
      %v1782 = vpop.f32.mrf.mxu0
      %v1783 = vadd.f32 %v1661, %v1782
      %1784 = vmatmul.f32.gmra.mxu0 %v1612
      %v1785 = vpop.f32.mrf.mxu0
      %v1786 = vadd.f32 %v1661, %v1785
      %1787 = vmatmul.f32.gmra.mxu0 %v1613
      %v1788 = vpop.f32.mrf.mxu0
      %v1789 = vadd.f32 %v1661, %v1788
      %1790 = vmatmul.f32.gmra.mxu0 %v1614
      %v1791 = vpop.f32.mrf.mxu0
      %v1792 = vadd.f32 %v1661, %v1791
      %1793 = vmatmul.f32.gmra.mxu0 %v1615
      %v1794 = vpop.f32.mrf.mxu0
      %v1795 = vadd.f32 %v1661, %v1794
      %1796 = vmatmul.f32.gmra.mxu0 %v1616
      %v1797 = vpop.f32.mrf.mxu0
      %v1798 = vadd.f32 %v1661, %v1797
      %1799 = vmatmul.f32.gmra.mxu0 %v1617
      %v1800 = vpop.f32.mrf.mxu0
      %v1801 = vadd.f32 %v1661, %v1800
      %1802 = vmatmul.f32.gmra.mxu0 %v1618
      %v1803 = vpop.f32.mrf.mxu0
      %v1804 = vadd.f32 %v1661, %v1803
      %1805 = vmatmul.f32.gmra.mxu0 %v1619
      %v1806 = vpop.f32.mrf.mxu0
      %v1807 = vadd.f32 %v1661, %v1806
      %1808 = vmatmul.f32.gmra.mxu0 %v1620
      %v1809 = vpop.f32.mrf.mxu0
      %v1810 = vadd.f32 %v1661, %v1809
      %1811 = vmatmul.f32.gmra.mxu0 %v1621
      %v1812 = vpop.f32.mrf.mxu0
      %v1813 = vadd.f32 %v1661, %v1812
      %1814 = vmatmul.f32.gmra.mxu0 %v1622
      %v1815 = vpop.f32.mrf.mxu0
      %v1816 = vadd.f32 %v1661, %v1815
      %1817 = vmatmul.f32.gmra.mxu0 %v1623
      %v1818 = vpop.f32.mrf.mxu0
      %v1819 = vadd.f32 %v1661, %v1818
      %1820 = vmatmul.f32.gmra.mxu0 %v1624
      %v1821 = vpop.f32.mrf.mxu0
      %v1822 = vadd.f32 %v1661, %v1821
      %1823 = vmatmul.f32.gmra.mxu0 %v1625
      %v1824 = vpop.f32.mrf.mxu0
      %v1825 = vadd.f32 %v1661, %v1824
      %1826 = vmatmul.f32.gmra.mxu0 %v1626
      %v1827 = vpop.f32.mrf.mxu0
      %v1828 = vadd.f32 %v1661, %v1827
      %1829 = vmatmul.f32.gmra.mxu0 %v1627
      %v1830 = vpop.f32.mrf.mxu0
      %v1831 = vadd.f32 %v1661, %v1830
      %1832 = vmatmul.f32.gmra.mxu0 %v1628
      %v1833 = vpop.f32.mrf.mxu0
      %v1834 = vadd.f32 %v1661, %v1833
      %1835 = vmatmul.f32.gmra.mxu0 %v1629
      %v1836 = vpop.f32.mrf.mxu0
      %v1837 = vadd.f32 %v1661, %v1836
      %1838 = vmatmul.f32.gmra.mxu0 %v1630
      %v1839 = vpop.f32.mrf.mxu0
      %v1840 = vadd.f32 %v1661, %v1839
      %1841 = vmatmul.f32.gmra.mxu0 %v1631
      %v1842 = vpop.f32.mrf.mxu0
      %v1843 = vadd.f32 %v1661, %v1842
      %1844 = vmatmul.f32.gmra.mxu0 %v1632
      %v1845 = vpop.f32.mrf.mxu0
      %v1846 = vadd.f32 %v1661, %v1845
      %1847 = vmatmul.f32.gmra.mxu0 %v1633
      %v1848 = vpop.f32.mrf.mxu0
      %v1849 = vadd.f32 %v1661, %v1848
      %1850 = vmatmul.f32.gmra.mxu0 %v1634
      %v1851 = vpop.f32.mrf.mxu0
      %v1852 = vadd.f32 %v1661, %v1851
      %1853 = vmatmul.f32.gmra.mxu0 %v1635
      %v1854 = vpop.f32.mrf.mxu0
      %v1855 = vadd.f32 %v1661, %v1854
      %1856 = vmatmul.f32.gmra.mxu0 %v1636
      %v1857 = vpop.f32.mrf.mxu0
      %v1858 = vadd.f32 %v1661, %v1857
      %1859 = vmatmul.f32.gmra.mxu0 %v1637
      %v1860 = vpop.f32.mrf.mxu0
      %v1861 = vadd.f32 %v1661, %v1860
      %1862 = vmatmul.f32.gmra.mxu0 %v1638
      %v1863 = vpop.f32.mrf.mxu0
      %v1864 = vadd.f32 %v1661, %v1863
      %1865 = vmatmul.f32.gmra.mxu0 %v1639
      %v1866 = vpop.f32.mrf.mxu0
      %v1867 = vadd.f32 %v1661, %v1866
      %1868 = vmatmul.f32.gmra.mxu0 %v1640
      %v1869 = vpop.f32.mrf.mxu0
      %v1870 = vadd.f32 %v1661, %v1869
      %1871 = vdwg.mxu0
      %v1872 = vtanh.pop %v1681
      %v1873 = vtanh.pop %v1684
      %v1874 = vtanh.pop %v1687
      %v1875 = vtanh.pop %v1690
      %v1876 = vtanh.pop %v1693
      %v1877 = vtanh.pop %v1696
      %v1878 = vtanh.pop %v1699
      %v1879 = vtanh.pop %v1702
      %v1880 = vtanh.pop %v1705
      %v1881 = vtanh.pop %v1708
      %v1882 = vtanh.pop %v1711
      %v1883 = vtanh.pop %v1714
      %v1884 = vtanh.pop %v1717
      %v1885 = vtanh.pop %v1720
      %v1886 = vtanh.pop %v1723
      %v1887 = vtanh.pop %v1726
      %v1888 = vtanh.pop %v1729
      %v1889 = vtanh.pop %v1732
      %v1890 = vtanh.pop %v1735
      %v1891 = vtanh.pop %v1738
      %v1892 = vtanh.pop %v1741
      %v1893 = vtanh.pop %v1744
      %v1894 = vtanh.pop %v1747
      %v1895 = vtanh.pop %v1750
      %v1896 = vtanh.pop %v1753
      %v1897 = vtanh.pop %v1756
      %v1898 = vtanh.pop %v1759
      %v1899 = vtanh.pop %v1762
      %v1900 = vtanh.pop %v1765
      %v1901 = vtanh.pop %v1768
      %v1902 = vtanh.pop %v1771
      %v1903 = vtanh.pop %v1774
      %v1904 = vtanh.pop %v1777
      %v1905 = vtanh.pop %v1780
      %v1906 = vtanh.pop %v1783
      %v1907 = vtanh.pop %v1786
      %v1908 = vtanh.pop %v1789
      %v1909 = vtanh.pop %v1792
      %v1910 = vtanh.pop %v1795
      %v1911 = vtanh.pop %v1798
      %v1912 = vtanh.pop %v1801
      %v1913 = vtanh.pop %v1804
      %v1914 = vtanh.pop %v1807
      %v1915 = vtanh.pop %v1810
      %v1916 = vtanh.pop %v1813
      %v1917 = vtanh.pop %v1816
      %v1918 = vtanh.pop %v1819
      %v1919 = vtanh.pop %v1822
      %v1920 = vtanh.pop %v1825
      %v1921 = vtanh.pop %v1828
      %v1922 = vtanh.pop %v1831
      %v1923 = vtanh.pop %v1834
      %v1924 = vtanh.pop %v1837
      %v1925 = vtanh.pop %v1840
      %v1926 = vtanh.pop %v1843
      %v1927 = vtanh.pop %v1846
      %v1928 = vtanh.pop %v1849
      %v1929 = vtanh.pop %v1852
      %v1930 = vtanh.pop %v1855
      %v1931 = vtanh.pop %v1858
      %v1932 = vtanh.pop %v1861
      %v1933 = vtanh.pop %v1864
      %v1934 = vtanh.pop %v1867
      %v1935 = vtanh.pop %v1870
      %s1936 = scalar_lea.vmem %s1, 640
      %v1937 = vld [vmem:[%s1936] sm:$0xff]
      %v1938 = vld [vmem:[%s1936 + $0x8] sm:$0xff]
      %v1939 = vld [vmem:[%s1936 + $0x10] sm:$0xff]
      %v1940 = vld [vmem:[%s1936 + $0x18] sm:$0xff]
      %v1941 = vld [vmem:[%s1936 + $0x20] sm:$0xff]
      %v1942 = vld [vmem:[%s1936 + $0x28] sm:$0xff]
      %v1943 = vld [vmem:[%s1936 + $0x30] sm:$0xff]
      %v1944 = vld [vmem:[%s1936 + $0x38] sm:$0xff]
      %v1945 = vld [vmem:[%s1936 + $0x40] sm:$0xff]
      %v1946 = vld [vmem:[%s1936 + $0x48] sm:$0xff]
      %v1947 = vld [vmem:[%s1936 + $0x50] sm:$0xff]
      %v1948 = vld [vmem:[%s1936 + $0x58] sm:$0xff]
      %v1949 = vld [vmem:[%s1936 + $0x60] sm:$0xff]
      %v1950 = vld [vmem:[%s1936 + $0x68] sm:$0xff]
      %v1951 = vld [vmem:[%s1936 + $0x70] sm:$0xff]
      %v1952 = vld [vmem:[%s1936 + $0x78] sm:$0xff]
      %s1953 = scalar_lea.vmem %s2, 5
      %v1954 = vld [vmem:[%s1953] sm:$0x1]
      %v1956 = vperm.slane %v1954, 0
      %1958 = vmatpush.msra.mxu0 %v1952
      %1959 = vmatpush.msra.mxu0 %v1951
      %1960 = vmatpush.msra.mxu0 %v1950
      %1961 = vmatpush.msra.mxu0 %v1949
      %1962 = vmatpush.msra.mxu0 %v1948
      %1963 = vmatpush.msra.mxu0 %v1947
      %1964 = vmatpush.msra.mxu0 %v1946
      %1965 = vmatpush.msra.mxu0 %v1945
      %1966 = vmatpush.msra.mxu0 %v1944
      %1967 = vmatpush.msra.mxu0 %v1943
      %1968 = vmatpush.msra.mxu0 %v1942
      %1969 = vmatpush.msra.mxu0 %v1941
      %1970 = vmatpush.msra.mxu0 %v1940
      %1971 = vmatpush.msra.mxu0 %v1939
      %1972 = vmatpush.msra.mxu0 %v1938
      %1973 = vmatpush.msra.mxu0 %v1937
      %1974 = vmatmul.f32.gmra.mxu0 %v1872
      %v1975 = vpop.f32.mrf.mxu0
      %v1976 = vadd.f32 %v1956, %v1975
      %1977 = vmatmul.f32.gmra.mxu0 %v1873
      %v1978 = vpop.f32.mrf.mxu0
      %v1979 = vadd.f32 %v1956, %v1978
      %1980 = vmatmul.f32.gmra.mxu0 %v1874
      %v1981 = vpop.f32.mrf.mxu0
      %v1982 = vadd.f32 %v1956, %v1981
      %1983 = vmatmul.f32.gmra.mxu0 %v1875
      %v1984 = vpop.f32.mrf.mxu0
      %v1985 = vadd.f32 %v1956, %v1984
      %1986 = vmatmul.f32.gmra.mxu0 %v1876
      %v1987 = vpop.f32.mrf.mxu0
      %v1988 = vadd.f32 %v1956, %v1987
      %1989 = vmatmul.f32.gmra.mxu0 %v1877
      %v1990 = vpop.f32.mrf.mxu0
      %v1991 = vadd.f32 %v1956, %v1990
      %1992 = vmatmul.f32.gmra.mxu0 %v1878
      %v1993 = vpop.f32.mrf.mxu0
      %v1994 = vadd.f32 %v1956, %v1993
      %1995 = vmatmul.f32.gmra.mxu0 %v1879
      %v1996 = vpop.f32.mrf.mxu0
      %v1997 = vadd.f32 %v1956, %v1996
      %1998 = vmatmul.f32.gmra.mxu0 %v1880
      %v1999 = vpop.f32.mrf.mxu0
      %v2000 = vadd.f32 %v1956, %v1999
      %2001 = vmatmul.f32.gmra.mxu0 %v1881
      %v2002 = vpop.f32.mrf.mxu0
      %v2003 = vadd.f32 %v1956, %v2002
      %2004 = vmatmul.f32.gmra.mxu0 %v1882
      %v2005 = vpop.f32.mrf.mxu0
      %v2006 = vadd.f32 %v1956, %v2005
      %2007 = vmatmul.f32.gmra.mxu0 %v1883
      %v2008 = vpop.f32.mrf.mxu0
      %v2009 = vadd.f32 %v1956, %v2008
      %2010 = vmatmul.f32.gmra.mxu0 %v1884
      %v2011 = vpop.f32.mrf.mxu0
      %v2012 = vadd.f32 %v1956, %v2011
      %2013 = vmatmul.f32.gmra.mxu0 %v1885
      %v2014 = vpop.f32.mrf.mxu0
      %v2015 = vadd.f32 %v1956, %v2014
      %2016 = vmatmul.f32.gmra.mxu0 %v1886
      %v2017 = vpop.f32.mrf.mxu0
      %v2018 = vadd.f32 %v1956, %v2017
      %2019 = vmatmul.f32.gmra.mxu0 %v1887
      %v2020 = vpop.f32.mrf.mxu0
      %v2021 = vadd.f32 %v1956, %v2020
      %2022 = vmatmul.f32.gmra.mxu0 %v1888
      %v2023 = vpop.f32.mrf.mxu0
      %v2024 = vadd.f32 %v1956, %v2023
      %2025 = vmatmul.f32.gmra.mxu0 %v1889
      %v2026 = vpop.f32.mrf.mxu0
      %v2027 = vadd.f32 %v1956, %v2026
      %2028 = vmatmul.f32.gmra.mxu0 %v1890
      %v2029 = vpop.f32.mrf.mxu0
      %v2030 = vadd.f32 %v1956, %v2029
      %2031 = vmatmul.f32.gmra.mxu0 %v1891
      %v2032 = vpop.f32.mrf.mxu0
      %v2033 = vadd.f32 %v1956, %v2032
      %2034 = vmatmul.f32.gmra.mxu0 %v1892
      %v2035 = vpop.f32.mrf.mxu0
      %v2036 = vadd.f32 %v1956, %v2035
      %2037 = vmatmul.f32.gmra.mxu0 %v1893
      %v2038 = vpop.f32.mrf.mxu0
      %v2039 = vadd.f32 %v1956, %v2038
      %2040 = vmatmul.f32.gmra.mxu0 %v1894
      %v2041 = vpop.f32.mrf.mxu0
      %v2042 = vadd.f32 %v1956, %v2041
      %2043 = vmatmul.f32.gmra.mxu0 %v1895
      %v2044 = vpop.f32.mrf.mxu0
      %v2045 = vadd.f32 %v1956, %v2044
      %2046 = vmatmul.f32.gmra.mxu0 %v1896
      %v2047 = vpop.f32.mrf.mxu0
      %v2048 = vadd.f32 %v1956, %v2047
      %2049 = vmatmul.f32.gmra.mxu0 %v1897
      %v2050 = vpop.f32.mrf.mxu0
      %v2051 = vadd.f32 %v1956, %v2050
      %2052 = vmatmul.f32.gmra.mxu0 %v1898
      %v2053 = vpop.f32.mrf.mxu0
      %v2054 = vadd.f32 %v1956, %v2053
      %2055 = vmatmul.f32.gmra.mxu0 %v1899
      %v2056 = vpop.f32.mrf.mxu0
      %v2057 = vadd.f32 %v1956, %v2056
      %2058 = vmatmul.f32.gmra.mxu0 %v1900
      %v2059 = vpop.f32.mrf.mxu0
      %v2060 = vadd.f32 %v1956, %v2059
      %2061 = vmatmul.f32.gmra.mxu0 %v1901
      %v2062 = vpop.f32.mrf.mxu0
      %v2063 = vadd.f32 %v1956, %v2062
      %2064 = vmatmul.f32.gmra.mxu0 %v1902
      %v2065 = vpop.f32.mrf.mxu0
      %v2066 = vadd.f32 %v1956, %v2065
      %2067 = vmatmul.f32.gmra.mxu0 %v1903
      %v2068 = vpop.f32.mrf.mxu0
      %v2069 = vadd.f32 %v1956, %v2068
      %2070 = vmatmul.f32.gmra.mxu0 %v1904
      %v2071 = vpop.f32.mrf.mxu0
      %v2072 = vadd.f32 %v1956, %v2071
      %2073 = vmatmul.f32.gmra.mxu0 %v1905
      %v2074 = vpop.f32.mrf.mxu0
      %v2075 = vadd.f32 %v1956, %v2074
      %2076 = vmatmul.f32.gmra.mxu0 %v1906
      %v2077 = vpop.f32.mrf.mxu0
      %v2078 = vadd.f32 %v1956, %v2077
      %2079 = vmatmul.f32.gmra.mxu0 %v1907
      %v2080 = vpop.f32.mrf.mxu0
      %v2081 = vadd.f32 %v1956, %v2080
      %2082 = vmatmul.f32.gmra.mxu0 %v1908
      %v2083 = vpop.f32.mrf.mxu0
      %v2084 = vadd.f32 %v1956, %v2083
      %2085 = vmatmul.f32.gmra.mxu0 %v1909
      %v2086 = vpop.f32.mrf.mxu0
      %v2087 = vadd.f32 %v1956, %v2086
      %2088 = vmatmul.f32.gmra.mxu0 %v1910
      %v2089 = vpop.f32.mrf.mxu0
      %v2090 = vadd.f32 %v1956, %v2089
      %2091 = vmatmul.f32.gmra.mxu0 %v1911
      %v2092 = vpop.f32.mrf.mxu0
      %v2093 = vadd.f32 %v1956, %v2092
      %2094 = vmatmul.f32.gmra.mxu0 %v1912
      %v2095 = vpop.f32.mrf.mxu0
      %v2096 = vadd.f32 %v1956, %v2095
      %2097 = vmatmul.f32.gmra.mxu0 %v1913
      %v2098 = vpop.f32.mrf.mxu0
      %v2099 = vadd.f32 %v1956, %v2098
      %2100 = vmatmul.f32.gmra.mxu0 %v1914
      %v2101 = vpop.f32.mrf.mxu0
      %v2102 = vadd.f32 %v1956, %v2101
      %2103 = vmatmul.f32.gmra.mxu0 %v1915
      %v2104 = vpop.f32.mrf.mxu0
      %v2105 = vadd.f32 %v1956, %v2104
      %2106 = vmatmul.f32.gmra.mxu0 %v1916
      %v2107 = vpop.f32.mrf.mxu0
      %v2108 = vadd.f32 %v1956, %v2107
      %2109 = vmatmul.f32.gmra.mxu0 %v1917
      %v2110 = vpop.f32.mrf.mxu0
      %v2111 = vadd.f32 %v1956, %v2110
      %2112 = vmatmul.f32.gmra.mxu0 %v1918
      %v2113 = vpop.f32.mrf.mxu0
      %v2114 = vadd.f32 %v1956, %v2113
      %2115 = vmatmul.f32.gmra.mxu0 %v1919
      %v2116 = vpop.f32.mrf.mxu0
      %v2117 = vadd.f32 %v1956, %v2116
      %2118 = vmatmul.f32.gmra.mxu0 %v1920
      %v2119 = vpop.f32.mrf.mxu0
      %v2120 = vadd.f32 %v1956, %v2119
      %2121 = vmatmul.f32.gmra.mxu0 %v1921
      %v2122 = vpop.f32.mrf.mxu0
      %v2123 = vadd.f32 %v1956, %v2122
      %2124 = vmatmul.f32.gmra.mxu0 %v1922
      %v2125 = vpop.f32.mrf.mxu0
      %v2126 = vadd.f32 %v1956, %v2125
      %2127 = vmatmul.f32.gmra.mxu0 %v1923
      %v2128 = vpop.f32.mrf.mxu0
      %v2129 = vadd.f32 %v1956, %v2128
      %2130 = vmatmul.f32.gmra.mxu0 %v1924
      %v2131 = vpop.f32.mrf.mxu0
      %v2132 = vadd.f32 %v1956, %v2131
      %2133 = vmatmul.f32.gmra.mxu0 %v1925
      %v2134 = vpop.f32.mrf.mxu0
      %v2135 = vadd.f32 %v1956, %v2134
      %2136 = vmatmul.f32.gmra.mxu0 %v1926
      %v2137 = vpop.f32.mrf.mxu0
      %v2138 = vadd.f32 %v1956, %v2137
      %2139 = vmatmul.f32.gmra.mxu0 %v1927
      %v2140 = vpop.f32.mrf.mxu0
      %v2141 = vadd.f32 %v1956, %v2140
      %2142 = vmatmul.f32.gmra.mxu0 %v1928
      %v2143 = vpop.f32.mrf.mxu0
      %v2144 = vadd.f32 %v1956, %v2143
      %2145 = vmatmul.f32.gmra.mxu0 %v1929
      %v2146 = vpop.f32.mrf.mxu0
      %v2147 = vadd.f32 %v1956, %v2146
      %2148 = vmatmul.f32.gmra.mxu0 %v1930
      %v2149 = vpop.f32.mrf.mxu0
      %v2150 = vadd.f32 %v1956, %v2149
      %2151 = vmatmul.f32.gmra.mxu0 %v1931
      %v2152 = vpop.f32.mrf.mxu0
      %v2153 = vadd.f32 %v1956, %v2152
      %2154 = vmatmul.f32.gmra.mxu0 %v1932
      %v2155 = vpop.f32.mrf.mxu0
      %v2156 = vadd.f32 %v1956, %v2155
      %2157 = vmatmul.f32.gmra.mxu0 %v1933
      %v2158 = vpop.f32.mrf.mxu0
      %v2159 = vadd.f32 %v1956, %v2158
      %2160 = vmatmul.f32.gmra.mxu0 %v1934
      %v2161 = vpop.f32.mrf.mxu0
      %v2162 = vadd.f32 %v1956, %v2161
      %2163 = vmatmul.f32.gmra.mxu0 %v1935
      %v2164 = vpop.f32.mrf.mxu0
      %v2165 = vadd.f32 %v1956, %v2164
      %2166 = vdwg.mxu0
      %v2167 = vtanh.pop %v1976
      %v2168 = vtanh.pop %v1979
      %v2169 = vtanh.pop %v1982
      %v2170 = vtanh.pop %v1985
      %v2171 = vtanh.pop %v1988
      %v2172 = vtanh.pop %v1991
      %v2173 = vtanh.pop %v1994
      %v2174 = vtanh.pop %v1997
      %v2175 = vtanh.pop %v2000
      %v2176 = vtanh.pop %v2003
      %v2177 = vtanh.pop %v2006
      %v2178 = vtanh.pop %v2009
      %v2179 = vtanh.pop %v2012
      %v2180 = vtanh.pop %v2015
      %v2181 = vtanh.pop %v2018
      %v2182 = vtanh.pop %v2021
      %v2183 = vtanh.pop %v2024
      %v2184 = vtanh.pop %v2027
      %v2185 = vtanh.pop %v2030
      %v2186 = vtanh.pop %v2033
      %v2187 = vtanh.pop %v2036
      %v2188 = vtanh.pop %v2039
      %v2189 = vtanh.pop %v2042
      %v2190 = vtanh.pop %v2045
      %v2191 = vtanh.pop %v2048
      %v2192 = vtanh.pop %v2051
      %v2193 = vtanh.pop %v2054
      %v2194 = vtanh.pop %v2057
      %v2195 = vtanh.pop %v2060
      %v2196 = vtanh.pop %v2063
      %v2197 = vtanh.pop %v2066
      %v2198 = vtanh.pop %v2069
      %v2199 = vtanh.pop %v2072
      %v2200 = vtanh.pop %v2075
      %v2201 = vtanh.pop %v2078
      %v2202 = vtanh.pop %v2081
      %v2203 = vtanh.pop %v2084
      %v2204 = vtanh.pop %v2087
      %v2205 = vtanh.pop %v2090
      %v2206 = vtanh.pop %v2093
      %v2207 = vtanh.pop %v2096
      %v2208 = vtanh.pop %v2099
      %v2209 = vtanh.pop %v2102
      %v2210 = vtanh.pop %v2105
      %v2211 = vtanh.pop %v2108
      %v2212 = vtanh.pop %v2111
      %v2213 = vtanh.pop %v2114
      %v2214 = vtanh.pop %v2117
      %v2215 = vtanh.pop %v2120
      %v2216 = vtanh.pop %v2123
      %v2217 = vtanh.pop %v2126
      %v2218 = vtanh.pop %v2129
      %v2219 = vtanh.pop %v2132
      %v2220 = vtanh.pop %v2135
      %v2221 = vtanh.pop %v2138
      %v2222 = vtanh.pop %v2141
      %v2223 = vtanh.pop %v2144
      %v2224 = vtanh.pop %v2147
      %v2225 = vtanh.pop %v2150
      %v2226 = vtanh.pop %v2153
      %v2227 = vtanh.pop %v2156
      %v2228 = vtanh.pop %v2159
      %v2229 = vtanh.pop %v2162
      %v2230 = vtanh.pop %v2165
      %s2231 = scalar_lea.vmem %s1, 768
      %v2232 = vld [vmem:[%s2231] sm:$0xff]
      %v2233 = vld [vmem:[%s2231 + $0x8] sm:$0xff]
      %v2234 = vld [vmem:[%s2231 + $0x10] sm:$0xff]
      %v2235 = vld [vmem:[%s2231 + $0x18] sm:$0xff]
      %v2236 = vld [vmem:[%s2231 + $0x20] sm:$0xff]
      %v2237 = vld [vmem:[%s2231 + $0x28] sm:$0xff]
      %v2238 = vld [vmem:[%s2231 + $0x30] sm:$0xff]
      %v2239 = vld [vmem:[%s2231 + $0x38] sm:$0xff]
      %v2240 = vld [vmem:[%s2231 + $0x40] sm:$0xff]
      %v2241 = vld [vmem:[%s2231 + $0x48] sm:$0xff]
      %v2242 = vld [vmem:[%s2231 + $0x50] sm:$0xff]
      %v2243 = vld [vmem:[%s2231 + $0x58] sm:$0xff]
      %v2244 = vld [vmem:[%s2231 + $0x60] sm:$0xff]
      %v2245 = vld [vmem:[%s2231 + $0x68] sm:$0xff]
      %v2246 = vld [vmem:[%s2231 + $0x70] sm:$0xff]
      %v2247 = vld [vmem:[%s2231 + $0x78] sm:$0xff]
      %s2248 = scalar_lea.vmem %s2, 6
      %v2249 = vld [vmem:[%s2248] sm:$0x1]
      %v2251 = vperm.slane %v2249, 0
      %2253 = vmatpush.msra.mxu0 %v2247
      %2254 = vmatpush.msra.mxu0 %v2246
      %2255 = vmatpush.msra.mxu0 %v2245
      %2256 = vmatpush.msra.mxu0 %v2244
      %2257 = vmatpush.msra.mxu0 %v2243
      %2258 = vmatpush.msra.mxu0 %v2242
      %2259 = vmatpush.msra.mxu0 %v2241
      %2260 = vmatpush.msra.mxu0 %v2240
      %2261 = vmatpush.msra.mxu0 %v2239
      %2262 = vmatpush.msra.mxu0 %v2238
      %2263 = vmatpush.msra.mxu0 %v2237
      %2264 = vmatpush.msra.mxu0 %v2236
      %2265 = vmatpush.msra.mxu0 %v2235
      %2266 = vmatpush.msra.mxu0 %v2234
      %2267 = vmatpush.msra.mxu0 %v2233
      %2268 = vmatpush.msra.mxu0 %v2232
      %2269 = vmatmul.f32.gmra.mxu0 %v2167
      %v2270 = vpop.f32.mrf.mxu0
      %v2271 = vadd.f32 %v2251, %v2270
      %2272 = vmatmul.f32.gmra.mxu0 %v2168
      %v2273 = vpop.f32.mrf.mxu0
      %v2274 = vadd.f32 %v2251, %v2273
      %2275 = vmatmul.f32.gmra.mxu0 %v2169
      %v2276 = vpop.f32.mrf.mxu0
      %v2277 = vadd.f32 %v2251, %v2276
      %2278 = vmatmul.f32.gmra.mxu0 %v2170
      %v2279 = vpop.f32.mrf.mxu0
      %v2280 = vadd.f32 %v2251, %v2279
      %2281 = vmatmul.f32.gmra.mxu0 %v2171
      %v2282 = vpop.f32.mrf.mxu0
      %v2283 = vadd.f32 %v2251, %v2282
      %2284 = vmatmul.f32.gmra.mxu0 %v2172
      %v2285 = vpop.f32.mrf.mxu0
      %v2286 = vadd.f32 %v2251, %v2285
      %2287 = vmatmul.f32.gmra.mxu0 %v2173
      %v2288 = vpop.f32.mrf.mxu0
      %v2289 = vadd.f32 %v2251, %v2288
      %2290 = vmatmul.f32.gmra.mxu0 %v2174
      %v2291 = vpop.f32.mrf.mxu0
      %v2292 = vadd.f32 %v2251, %v2291
      %2293 = vmatmul.f32.gmra.mxu0 %v2175
      %v2294 = vpop.f32.mrf.mxu0
      %v2295 = vadd.f32 %v2251, %v2294
      %2296 = vmatmul.f32.gmra.mxu0 %v2176
      %v2297 = vpop.f32.mrf.mxu0
      %v2298 = vadd.f32 %v2251, %v2297
      %2299 = vmatmul.f32.gmra.mxu0 %v2177
      %v2300 = vpop.f32.mrf.mxu0
      %v2301 = vadd.f32 %v2251, %v2300
      %2302 = vmatmul.f32.gmra.mxu0 %v2178
      %v2303 = vpop.f32.mrf.mxu0
      %v2304 = vadd.f32 %v2251, %v2303
      %2305 = vmatmul.f32.gmra.mxu0 %v2179
      %v2306 = vpop.f32.mrf.mxu0
      %v2307 = vadd.f32 %v2251, %v2306
      %2308 = vmatmul.f32.gmra.mxu0 %v2180
      %v2309 = vpop.f32.mrf.mxu0
      %v2310 = vadd.f32 %v2251, %v2309
      %2311 = vmatmul.f32.gmra.mxu0 %v2181
      %v2312 = vpop.f32.mrf.mxu0
      %v2313 = vadd.f32 %v2251, %v2312
      %2314 = vmatmul.f32.gmra.mxu0 %v2182
      %v2315 = vpop.f32.mrf.mxu0
      %v2316 = vadd.f32 %v2251, %v2315
      %2317 = vmatmul.f32.gmra.mxu0 %v2183
      %v2318 = vpop.f32.mrf.mxu0
      %v2319 = vadd.f32 %v2251, %v2318
      %2320 = vmatmul.f32.gmra.mxu0 %v2184
      %v2321 = vpop.f32.mrf.mxu0
      %v2322 = vadd.f32 %v2251, %v2321
      %2323 = vmatmul.f32.gmra.mxu0 %v2185
      %v2324 = vpop.f32.mrf.mxu0
      %v2325 = vadd.f32 %v2251, %v2324
      %2326 = vmatmul.f32.gmra.mxu0 %v2186
      %v2327 = vpop.f32.mrf.mxu0
      %v2328 = vadd.f32 %v2251, %v2327
      %2329 = vmatmul.f32.gmra.mxu0 %v2187
      %v2330 = vpop.f32.mrf.mxu0
      %v2331 = vadd.f32 %v2251, %v2330
      %2332 = vmatmul.f32.gmra.mxu0 %v2188
      %v2333 = vpop.f32.mrf.mxu0
      %v2334 = vadd.f32 %v2251, %v2333
      %2335 = vmatmul.f32.gmra.mxu0 %v2189
      %v2336 = vpop.f32.mrf.mxu0
      %v2337 = vadd.f32 %v2251, %v2336
      %2338 = vmatmul.f32.gmra.mxu0 %v2190
      %v2339 = vpop.f32.mrf.mxu0
      %v2340 = vadd.f32 %v2251, %v2339
      %2341 = vmatmul.f32.gmra.mxu0 %v2191
      %v2342 = vpop.f32.mrf.mxu0
      %v2343 = vadd.f32 %v2251, %v2342
      %2344 = vmatmul.f32.gmra.mxu0 %v2192
      %v2345 = vpop.f32.mrf.mxu0
      %v2346 = vadd.f32 %v2251, %v2345
      %2347 = vmatmul.f32.gmra.mxu0 %v2193
      %v2348 = vpop.f32.mrf.mxu0
      %v2349 = vadd.f32 %v2251, %v2348
      %2350 = vmatmul.f32.gmra.mxu0 %v2194
      %v2351 = vpop.f32.mrf.mxu0
      %v2352 = vadd.f32 %v2251, %v2351
      %2353 = vmatmul.f32.gmra.mxu0 %v2195
      %v2354 = vpop.f32.mrf.mxu0
      %v2355 = vadd.f32 %v2251, %v2354
      %2356 = vmatmul.f32.gmra.mxu0 %v2196
      %v2357 = vpop.f32.mrf.mxu0
      %v2358 = vadd.f32 %v2251, %v2357
      %2359 = vmatmul.f32.gmra.mxu0 %v2197
      %v2360 = vpop.f32.mrf.mxu0
      %v2361 = vadd.f32 %v2251, %v2360
      %2362 = vmatmul.f32.gmra.mxu0 %v2198
      %v2363 = vpop.f32.mrf.mxu0
      %v2364 = vadd.f32 %v2251, %v2363
      %2365 = vmatmul.f32.gmra.mxu0 %v2199
      %v2366 = vpop.f32.mrf.mxu0
      %v2367 = vadd.f32 %v2251, %v2366
      %2368 = vmatmul.f32.gmra.mxu0 %v2200
      %v2369 = vpop.f32.mrf.mxu0
      %v2370 = vadd.f32 %v2251, %v2369
      %2371 = vmatmul.f32.gmra.mxu0 %v2201
      %v2372 = vpop.f32.mrf.mxu0
      %v2373 = vadd.f32 %v2251, %v2372
      %2374 = vmatmul.f32.gmra.mxu0 %v2202
      %v2375 = vpop.f32.mrf.mxu0
      %v2376 = vadd.f32 %v2251, %v2375
      %2377 = vmatmul.f32.gmra.mxu0 %v2203
      %v2378 = vpop.f32.mrf.mxu0
      %v2379 = vadd.f32 %v2251, %v2378
      %2380 = vmatmul.f32.gmra.mxu0 %v2204
      %v2381 = vpop.f32.mrf.mxu0
      %v2382 = vadd.f32 %v2251, %v2381
      %2383 = vmatmul.f32.gmra.mxu0 %v2205
      %v2384 = vpop.f32.mrf.mxu0
      %v2385 = vadd.f32 %v2251, %v2384
      %2386 = vmatmul.f32.gmra.mxu0 %v2206
      %v2387 = vpop.f32.mrf.mxu0
      %v2388 = vadd.f32 %v2251, %v2387
      %2389 = vmatmul.f32.gmra.mxu0 %v2207
      %v2390 = vpop.f32.mrf.mxu0
      %v2391 = vadd.f32 %v2251, %v2390
      %2392 = vmatmul.f32.gmra.mxu0 %v2208
      %v2393 = vpop.f32.mrf.mxu0
      %v2394 = vadd.f32 %v2251, %v2393
      %2395 = vmatmul.f32.gmra.mxu0 %v2209
      %v2396 = vpop.f32.mrf.mxu0
      %v2397 = vadd.f32 %v2251, %v2396
      %2398 = vmatmul.f32.gmra.mxu0 %v2210
      %v2399 = vpop.f32.mrf.mxu0
      %v2400 = vadd.f32 %v2251, %v2399
      %2401 = vmatmul.f32.gmra.mxu0 %v2211
      %v2402 = vpop.f32.mrf.mxu0
      %v2403 = vadd.f32 %v2251, %v2402
      %2404 = vmatmul.f32.gmra.mxu0 %v2212
      %v2405 = vpop.f32.mrf.mxu0
      %v2406 = vadd.f32 %v2251, %v2405
      %2407 = vmatmul.f32.gmra.mxu0 %v2213
      %v2408 = vpop.f32.mrf.mxu0
      %v2409 = vadd.f32 %v2251, %v2408
      %2410 = vmatmul.f32.gmra.mxu0 %v2214
      %v2411 = vpop.f32.mrf.mxu0
      %v2412 = vadd.f32 %v2251, %v2411
      %2413 = vmatmul.f32.gmra.mxu0 %v2215
      %v2414 = vpop.f32.mrf.mxu0
      %v2415 = vadd.f32 %v2251, %v2414
      %2416 = vmatmul.f32.gmra.mxu0 %v2216
      %v2417 = vpop.f32.mrf.mxu0
      %v2418 = vadd.f32 %v2251, %v2417
      %2419 = vmatmul.f32.gmra.mxu0 %v2217
      %v2420 = vpop.f32.mrf.mxu0
      %v2421 = vadd.f32 %v2251, %v2420
      %2422 = vmatmul.f32.gmra.mxu0 %v2218
      %v2423 = vpop.f32.mrf.mxu0
      %v2424 = vadd.f32 %v2251, %v2423
      %2425 = vmatmul.f32.gmra.mxu0 %v2219
      %v2426 = vpop.f32.mrf.mxu0
      %v2427 = vadd.f32 %v2251, %v2426
      %2428 = vmatmul.f32.gmra.mxu0 %v2220
      %v2429 = vpop.f32.mrf.mxu0
      %v2430 = vadd.f32 %v2251, %v2429
      %2431 = vmatmul.f32.gmra.mxu0 %v2221
      %v2432 = vpop.f32.mrf.mxu0
      %v2433 = vadd.f32 %v2251, %v2432
      %2434 = vmatmul.f32.gmra.mxu0 %v2222
      %v2435 = vpop.f32.mrf.mxu0
      %v2436 = vadd.f32 %v2251, %v2435
      %2437 = vmatmul.f32.gmra.mxu0 %v2223
      %v2438 = vpop.f32.mrf.mxu0
      %v2439 = vadd.f32 %v2251, %v2438
      %2440 = vmatmul.f32.gmra.mxu0 %v2224
      %v2441 = vpop.f32.mrf.mxu0
      %v2442 = vadd.f32 %v2251, %v2441
      %2443 = vmatmul.f32.gmra.mxu0 %v2225
      %v2444 = vpop.f32.mrf.mxu0
      %v2445 = vadd.f32 %v2251, %v2444
      %2446 = vmatmul.f32.gmra.mxu0 %v2226
      %v2447 = vpop.f32.mrf.mxu0
      %v2448 = vadd.f32 %v2251, %v2447
      %2449 = vmatmul.f32.gmra.mxu0 %v2227
      %v2450 = vpop.f32.mrf.mxu0
      %v2451 = vadd.f32 %v2251, %v2450
      %2452 = vmatmul.f32.gmra.mxu0 %v2228
      %v2453 = vpop.f32.mrf.mxu0
      %v2454 = vadd.f32 %v2251, %v2453
      %2455 = vmatmul.f32.gmra.mxu0 %v2229
      %v2456 = vpop.f32.mrf.mxu0
      %v2457 = vadd.f32 %v2251, %v2456
      %2458 = vmatmul.f32.gmra.mxu0 %v2230
      %v2459 = vpop.f32.mrf.mxu0
      %v2460 = vadd.f32 %v2251, %v2459
      %2461 = vdwg.mxu0
      %v2462 = vtanh.pop %v2271
      %v2463 = vtanh.pop %v2274
      %v2464 = vtanh.pop %v2277
      %v2465 = vtanh.pop %v2280
      %v2466 = vtanh.pop %v2283
      %v2467 = vtanh.pop %v2286
      %v2468 = vtanh.pop %v2289
      %v2469 = vtanh.pop %v2292
      %v2470 = vtanh.pop %v2295
      %v2471 = vtanh.pop %v2298
      %v2472 = vtanh.pop %v2301
      %v2473 = vtanh.pop %v2304
      %v2474 = vtanh.pop %v2307
      %v2475 = vtanh.pop %v2310
      %v2476 = vtanh.pop %v2313
      %v2477 = vtanh.pop %v2316
      %v2478 = vtanh.pop %v2319
      %v2479 = vtanh.pop %v2322
      %v2480 = vtanh.pop %v2325
      %v2481 = vtanh.pop %v2328
      %v2482 = vtanh.pop %v2331
      %v2483 = vtanh.pop %v2334
      %v2484 = vtanh.pop %v2337
      %v2485 = vtanh.pop %v2340
      %v2486 = vtanh.pop %v2343
      %v2487 = vtanh.pop %v2346
      %v2488 = vtanh.pop %v2349
      %v2489 = vtanh.pop %v2352
      %v2490 = vtanh.pop %v2355
      %v2491 = vtanh.pop %v2358
      %v2492 = vtanh.pop %v2361
      %v2493 = vtanh.pop %v2364
      %v2494 = vtanh.pop %v2367
      %v2495 = vtanh.pop %v2370
      %v2496 = vtanh.pop %v2373
      %v2497 = vtanh.pop %v2376
      %v2498 = vtanh.pop %v2379
      %v2499 = vtanh.pop %v2382
      %v2500 = vtanh.pop %v2385
      %v2501 = vtanh.pop %v2388
      %v2502 = vtanh.pop %v2391
      %v2503 = vtanh.pop %v2394
      %v2504 = vtanh.pop %v2397
      %v2505 = vtanh.pop %v2400
      %v2506 = vtanh.pop %v2403
      %v2507 = vtanh.pop %v2406
      %v2508 = vtanh.pop %v2409
      %v2509 = vtanh.pop %v2412
      %v2510 = vtanh.pop %v2415
      %v2511 = vtanh.pop %v2418
      %v2512 = vtanh.pop %v2421
      %v2513 = vtanh.pop %v2424
      %v2514 = vtanh.pop %v2427
      %v2515 = vtanh.pop %v2430
      %v2516 = vtanh.pop %v2433
      %v2517 = vtanh.pop %v2436
      %v2518 = vtanh.pop %v2439
      %v2519 = vtanh.pop %v2442
      %v2520 = vtanh.pop %v2445
      %v2521 = vtanh.pop %v2448
      %v2522 = vtanh.pop %v2451
      %v2523 = vtanh.pop %v2454
      %v2524 = vtanh.pop %v2457
      %v2525 = vtanh.pop %v2460
      %s2526 = scalar_lea.vmem %s1, 896
      %v2527 = vld [vmem:[%s2526] sm:$0xff]
      %v2528 = vld [vmem:[%s2526 + $0x8] sm:$0xff]
      %v2529 = vld [vmem:[%s2526 + $0x10] sm:$0xff]
      %v2530 = vld [vmem:[%s2526 + $0x18] sm:$0xff]
      %v2531 = vld [vmem:[%s2526 + $0x20] sm:$0xff]
      %v2532 = vld [vmem:[%s2526 + $0x28] sm:$0xff]
      %v2533 = vld [vmem:[%s2526 + $0x30] sm:$0xff]
      %v2534 = vld [vmem:[%s2526 + $0x38] sm:$0xff]
      %v2535 = vld [vmem:[%s2526 + $0x40] sm:$0xff]
      %v2536 = vld [vmem:[%s2526 + $0x48] sm:$0xff]
      %v2537 = vld [vmem:[%s2526 + $0x50] sm:$0xff]
      %v2538 = vld [vmem:[%s2526 + $0x58] sm:$0xff]
      %v2539 = vld [vmem:[%s2526 + $0x60] sm:$0xff]
      %v2540 = vld [vmem:[%s2526 + $0x68] sm:$0xff]
      %v2541 = vld [vmem:[%s2526 + $0x70] sm:$0xff]
      %v2542 = vld [vmem:[%s2526 + $0x78] sm:$0xff]
      %s2543 = scalar_lea.vmem %s2, 7
      %v2544 = vld [vmem:[%s2543] sm:$0x1]
      %v2546 = vperm.slane %v2544, 0
      %2548 = vmatpush.msra.mxu0 %v2542
      %2549 = vmatpush.msra.mxu0 %v2541
      %2550 = vmatpush.msra.mxu0 %v2540
      %2551 = vmatpush.msra.mxu0 %v2539
      %2552 = vmatpush.msra.mxu0 %v2538
      %2553 = vmatpush.msra.mxu0 %v2537
      %2554 = vmatpush.msra.mxu0 %v2536
      %2555 = vmatpush.msra.mxu0 %v2535
      %2556 = vmatpush.msra.mxu0 %v2534
      %2557 = vmatpush.msra.mxu0 %v2533
      %2558 = vmatpush.msra.mxu0 %v2532
      %2559 = vmatpush.msra.mxu0 %v2531
      %2560 = vmatpush.msra.mxu0 %v2530
      %2561 = vmatpush.msra.mxu0 %v2529
      %2562 = vmatpush.msra.mxu0 %v2528
      %2563 = vmatpush.msra.mxu0 %v2527
      %2564 = vmatmul.f32.gmra.mxu0 %v2462
      %v2565 = vpop.f32.mrf.mxu0
      %v2566 = vadd.f32 %v2546, %v2565
      %2567 = vmatmul.f32.gmra.mxu0 %v2463
      %v2568 = vpop.f32.mrf.mxu0
      %v2569 = vadd.f32 %v2546, %v2568
      %2570 = vmatmul.f32.gmra.mxu0 %v2464
      %v2571 = vpop.f32.mrf.mxu0
      %v2572 = vadd.f32 %v2546, %v2571
      %2573 = vmatmul.f32.gmra.mxu0 %v2465
      %v2574 = vpop.f32.mrf.mxu0
      %v2575 = vadd.f32 %v2546, %v2574
      %2576 = vmatmul.f32.gmra.mxu0 %v2466
      %v2577 = vpop.f32.mrf.mxu0
      %v2578 = vadd.f32 %v2546, %v2577
      %2579 = vmatmul.f32.gmra.mxu0 %v2467
      %v2580 = vpop.f32.mrf.mxu0
      %v2581 = vadd.f32 %v2546, %v2580
      %2582 = vmatmul.f32.gmra.mxu0 %v2468
      %v2583 = vpop.f32.mrf.mxu0
      %v2584 = vadd.f32 %v2546, %v2583
      %2585 = vmatmul.f32.gmra.mxu0 %v2469
      %v2586 = vpop.f32.mrf.mxu0
      %v2587 = vadd.f32 %v2546, %v2586
      %2588 = vmatmul.f32.gmra.mxu0 %v2470
      %v2589 = vpop.f32.mrf.mxu0
      %v2590 = vadd.f32 %v2546, %v2589
      %2591 = vmatmul.f32.gmra.mxu0 %v2471
      %v2592 = vpop.f32.mrf.mxu0
      %v2593 = vadd.f32 %v2546, %v2592
      %2594 = vmatmul.f32.gmra.mxu0 %v2472
      %v2595 = vpop.f32.mrf.mxu0
      %v2596 = vadd.f32 %v2546, %v2595
      %2597 = vmatmul.f32.gmra.mxu0 %v2473
      %v2598 = vpop.f32.mrf.mxu0
      %v2599 = vadd.f32 %v2546, %v2598
      %2600 = vmatmul.f32.gmra.mxu0 %v2474
      %v2601 = vpop.f32.mrf.mxu0
      %v2602 = vadd.f32 %v2546, %v2601
      %2603 = vmatmul.f32.gmra.mxu0 %v2475
      %v2604 = vpop.f32.mrf.mxu0
      %v2605 = vadd.f32 %v2546, %v2604
      %2606 = vmatmul.f32.gmra.mxu0 %v2476
      %v2607 = vpop.f32.mrf.mxu0
      %v2608 = vadd.f32 %v2546, %v2607
      %2609 = vmatmul.f32.gmra.mxu0 %v2477
      %v2610 = vpop.f32.mrf.mxu0
      %v2611 = vadd.f32 %v2546, %v2610
      %2612 = vmatmul.f32.gmra.mxu0 %v2478
      %v2613 = vpop.f32.mrf.mxu0
      %v2614 = vadd.f32 %v2546, %v2613
      %2615 = vmatmul.f32.gmra.mxu0 %v2479
      %v2616 = vpop.f32.mrf.mxu0
      %v2617 = vadd.f32 %v2546, %v2616
      %2618 = vmatmul.f32.gmra.mxu0 %v2480
      %v2619 = vpop.f32.mrf.mxu0
      %v2620 = vadd.f32 %v2546, %v2619
      %2621 = vmatmul.f32.gmra.mxu0 %v2481
      %v2622 = vpop.f32.mrf.mxu0
      %v2623 = vadd.f32 %v2546, %v2622
      %2624 = vmatmul.f32.gmra.mxu0 %v2482
      %v2625 = vpop.f32.mrf.mxu0
      %v2626 = vadd.f32 %v2546, %v2625
      %2627 = vmatmul.f32.gmra.mxu0 %v2483
      %v2628 = vpop.f32.mrf.mxu0
      %v2629 = vadd.f32 %v2546, %v2628
      %2630 = vmatmul.f32.gmra.mxu0 %v2484
      %v2631 = vpop.f32.mrf.mxu0
      %v2632 = vadd.f32 %v2546, %v2631
      %2633 = vmatmul.f32.gmra.mxu0 %v2485
      %v2634 = vpop.f32.mrf.mxu0
      %v2635 = vadd.f32 %v2546, %v2634
      %2636 = vmatmul.f32.gmra.mxu0 %v2486
      %v2637 = vpop.f32.mrf.mxu0
      %v2638 = vadd.f32 %v2546, %v2637
      %2639 = vmatmul.f32.gmra.mxu0 %v2487
      %v2640 = vpop.f32.mrf.mxu0
      %v2641 = vadd.f32 %v2546, %v2640
      %2642 = vmatmul.f32.gmra.mxu0 %v2488
      %v2643 = vpop.f32.mrf.mxu0
      %v2644 = vadd.f32 %v2546, %v2643
      %2645 = vmatmul.f32.gmra.mxu0 %v2489
      %v2646 = vpop.f32.mrf.mxu0
      %v2647 = vadd.f32 %v2546, %v2646
      %2648 = vmatmul.f32.gmra.mxu0 %v2490
      %v2649 = vpop.f32.mrf.mxu0
      %v2650 = vadd.f32 %v2546, %v2649
      %2651 = vmatmul.f32.gmra.mxu0 %v2491
      %v2652 = vpop.f32.mrf.mxu0
      %v2653 = vadd.f32 %v2546, %v2652
      %2654 = vmatmul.f32.gmra.mxu0 %v2492
      %v2655 = vpop.f32.mrf.mxu0
      %v2656 = vadd.f32 %v2546, %v2655
      %2657 = vmatmul.f32.gmra.mxu0 %v2493
      %v2658 = vpop.f32.mrf.mxu0
      %v2659 = vadd.f32 %v2546, %v2658
      %2660 = vmatmul.f32.gmra.mxu0 %v2494
      %v2661 = vpop.f32.mrf.mxu0
      %v2662 = vadd.f32 %v2546, %v2661
      %2663 = vmatmul.f32.gmra.mxu0 %v2495
      %v2664 = vpop.f32.mrf.mxu0
      %v2665 = vadd.f32 %v2546, %v2664
      %2666 = vmatmul.f32.gmra.mxu0 %v2496
      %v2667 = vpop.f32.mrf.mxu0
      %v2668 = vadd.f32 %v2546, %v2667
      %2669 = vmatmul.f32.gmra.mxu0 %v2497
      %v2670 = vpop.f32.mrf.mxu0
      %v2671 = vadd.f32 %v2546, %v2670
      %2672 = vmatmul.f32.gmra.mxu0 %v2498
      %v2673 = vpop.f32.mrf.mxu0
      %v2674 = vadd.f32 %v2546, %v2673
      %2675 = vmatmul.f32.gmra.mxu0 %v2499
      %v2676 = vpop.f32.mrf.mxu0
      %v2677 = vadd.f32 %v2546, %v2676
      %2678 = vmatmul.f32.gmra.mxu0 %v2500
      %v2679 = vpop.f32.mrf.mxu0
      %v2680 = vadd.f32 %v2546, %v2679
      %2681 = vmatmul.f32.gmra.mxu0 %v2501
      %v2682 = vpop.f32.mrf.mxu0
      %v2683 = vadd.f32 %v2546, %v2682
      %2684 = vmatmul.f32.gmra.mxu0 %v2502
      %v2685 = vpop.f32.mrf.mxu0
      %v2686 = vadd.f32 %v2546, %v2685
      %2687 = vmatmul.f32.gmra.mxu0 %v2503
      %v2688 = vpop.f32.mrf.mxu0
      %v2689 = vadd.f32 %v2546, %v2688
      %2690 = vmatmul.f32.gmra.mxu0 %v2504
      %v2691 = vpop.f32.mrf.mxu0
      %v2692 = vadd.f32 %v2546, %v2691
      %2693 = vmatmul.f32.gmra.mxu0 %v2505
      %v2694 = vpop.f32.mrf.mxu0
      %v2695 = vadd.f32 %v2546, %v2694
      %2696 = vmatmul.f32.gmra.mxu0 %v2506
      %v2697 = vpop.f32.mrf.mxu0
      %v2698 = vadd.f32 %v2546, %v2697
      %2699 = vmatmul.f32.gmra.mxu0 %v2507
      %v2700 = vpop.f32.mrf.mxu0
      %v2701 = vadd.f32 %v2546, %v2700
      %2702 = vmatmul.f32.gmra.mxu0 %v2508
      %v2703 = vpop.f32.mrf.mxu0
      %v2704 = vadd.f32 %v2546, %v2703
      %2705 = vmatmul.f32.gmra.mxu0 %v2509
      %v2706 = vpop.f32.mrf.mxu0
      %v2707 = vadd.f32 %v2546, %v2706
      %2708 = vmatmul.f32.gmra.mxu0 %v2510
      %v2709 = vpop.f32.mrf.mxu0
      %v2710 = vadd.f32 %v2546, %v2709
      %2711 = vmatmul.f32.gmra.mxu0 %v2511
      %v2712 = vpop.f32.mrf.mxu0
      %v2713 = vadd.f32 %v2546, %v2712
      %2714 = vmatmul.f32.gmra.mxu0 %v2512
      %v2715 = vpop.f32.mrf.mxu0
      %v2716 = vadd.f32 %v2546, %v2715
      %2717 = vmatmul.f32.gmra.mxu0 %v2513
      %v2718 = vpop.f32.mrf.mxu0
      %v2719 = vadd.f32 %v2546, %v2718
      %2720 = vmatmul.f32.gmra.mxu0 %v2514
      %v2721 = vpop.f32.mrf.mxu0
      %v2722 = vadd.f32 %v2546, %v2721
      %2723 = vmatmul.f32.gmra.mxu0 %v2515
      %v2724 = vpop.f32.mrf.mxu0
      %v2725 = vadd.f32 %v2546, %v2724
      %2726 = vmatmul.f32.gmra.mxu0 %v2516
      %v2727 = vpop.f32.mrf.mxu0
      %v2728 = vadd.f32 %v2546, %v2727
      %2729 = vmatmul.f32.gmra.mxu0 %v2517
      %v2730 = vpop.f32.mrf.mxu0
      %v2731 = vadd.f32 %v2546, %v2730
      %2732 = vmatmul.f32.gmra.mxu0 %v2518
      %v2733 = vpop.f32.mrf.mxu0
      %v2734 = vadd.f32 %v2546, %v2733
      %2735 = vmatmul.f32.gmra.mxu0 %v2519
      %v2736 = vpop.f32.mrf.mxu0
      %v2737 = vadd.f32 %v2546, %v2736
      %2738 = vmatmul.f32.gmra.mxu0 %v2520
      %v2739 = vpop.f32.mrf.mxu0
      %v2740 = vadd.f32 %v2546, %v2739
      %2741 = vmatmul.f32.gmra.mxu0 %v2521
      %v2742 = vpop.f32.mrf.mxu0
      %v2743 = vadd.f32 %v2546, %v2742
      %2744 = vmatmul.f32.gmra.mxu0 %v2522
      %v2745 = vpop.f32.mrf.mxu0
      %v2746 = vadd.f32 %v2546, %v2745
      %2747 = vmatmul.f32.gmra.mxu0 %v2523
      %v2748 = vpop.f32.mrf.mxu0
      %v2749 = vadd.f32 %v2546, %v2748
      %2750 = vmatmul.f32.gmra.mxu0 %v2524
      %v2751 = vpop.f32.mrf.mxu0
      %v2752 = vadd.f32 %v2546, %v2751
      %2753 = vmatmul.f32.gmra.mxu0 %v2525
      %v2754 = vpop.f32.mrf.mxu0
      %v2755 = vadd.f32 %v2546, %v2754
      %2756 = vdwg.mxu0
      %v2757 = vtanh.pop %v2566
      %v2758 = vtanh.pop %v2569
      %v2759 = vtanh.pop %v2572
      %v2760 = vtanh.pop %v2575
      %v2761 = vtanh.pop %v2578
      %v2762 = vtanh.pop %v2581
      %v2763 = vtanh.pop %v2584
      %v2764 = vtanh.pop %v2587
      %v2765 = vtanh.pop %v2590
      %v2766 = vtanh.pop %v2593
      %v2767 = vtanh.pop %v2596
      %v2768 = vtanh.pop %v2599
      %v2769 = vtanh.pop %v2602
      %v2770 = vtanh.pop %v2605
      %v2771 = vtanh.pop %v2608
      %v2772 = vtanh.pop %v2611
      %v2773 = vtanh.pop %v2614
      %v2774 = vtanh.pop %v2617
      %v2775 = vtanh.pop %v2620
      %v2776 = vtanh.pop %v2623
      %v2777 = vtanh.pop %v2626
      %v2778 = vtanh.pop %v2629
      %v2779 = vtanh.pop %v2632
      %v2780 = vtanh.pop %v2635
      %v2781 = vtanh.pop %v2638
      %v2782 = vtanh.pop %v2641
      %v2783 = vtanh.pop %v2644
      %v2784 = vtanh.pop %v2647
      %v2785 = vtanh.pop %v2650
      %v2786 = vtanh.pop %v2653
      %v2787 = vtanh.pop %v2656
      %v2788 = vtanh.pop %v2659
      %v2789 = vtanh.pop %v2662
      %v2790 = vtanh.pop %v2665
      %v2791 = vtanh.pop %v2668
      %v2792 = vtanh.pop %v2671
      %v2793 = vtanh.pop %v2674
      %v2794 = vtanh.pop %v2677
      %v2795 = vtanh.pop %v2680
      %v2796 = vtanh.pop %v2683
      %v2797 = vtanh.pop %v2686
      %v2798 = vtanh.pop %v2689
      %v2799 = vtanh.pop %v2692
      %v2800 = vtanh.pop %v2695
      %v2801 = vtanh.pop %v2698
      %v2802 = vtanh.pop %v2701
      %v2803 = vtanh.pop %v2704
      %v2804 = vtanh.pop %v2707
      %v2805 = vtanh.pop %v2710
      %v2806 = vtanh.pop %v2713
      %v2807 = vtanh.pop %v2716
      %v2808 = vtanh.pop %v2719
      %v2809 = vtanh.pop %v2722
      %v2810 = vtanh.pop %v2725
      %v2811 = vtanh.pop %v2728
      %v2812 = vtanh.pop %v2731
      %v2813 = vtanh.pop %v2734
      %v2814 = vtanh.pop %v2737
      %v2815 = vtanh.pop %v2740
      %v2816 = vtanh.pop %v2743
      %v2817 = vtanh.pop %v2746
      %v2818 = vtanh.pop %v2749
      %v2819 = vtanh.pop %v2752
      %v2820 = vtanh.pop %v2755
      %vm2821 = vcmask 7168
      %2822 = vst.msk [vmem:[%s172] sm:$0xff] %vm2821, %v2757
      %2823 = vst.msk [vmem:[%s172 + $0x8] sm:$0xff] %vm2821, %v2758
      %2824 = vst.msk [vmem:[%s172 + $0x10] sm:$0xff] %vm2821, %v2759
      %2825 = vst.msk [vmem:[%s172 + $0x18] sm:$0xff] %vm2821, %v2760
      %2826 = vst.msk [vmem:[%s172 + $0x20] sm:$0xff] %vm2821, %v2761
      %2827 = vst.msk [vmem:[%s172 + $0x28] sm:$0xff] %vm2821, %v2762
      %2828 = vst.msk [vmem:[%s172 + $0x30] sm:$0xff] %vm2821, %v2763
      %2829 = vst.msk [vmem:[%s172 + $0x38] sm:$0xff] %vm2821, %v2764
      %2830 = vst.msk [vmem:[%s172 + $0x40] sm:$0xff] %vm2821, %v2765
      %2831 = vst.msk [vmem:[%s172 + $0x48] sm:$0xff] %vm2821, %v2766
      %2832 = vst.msk [vmem:[%s172 + $0x50] sm:$0xff] %vm2821, %v2767
      %2833 = vst.msk [vmem:[%s172 + $0x58] sm:$0xff] %vm2821, %v2768
      %2834 = vst.msk [vmem:[%s172 + $0x60] sm:$0xff] %vm2821, %v2769
      %2835 = vst.msk [vmem:[%s172 + $0x68] sm:$0xff] %vm2821, %v2770
      %2836 = vst.msk [vmem:[%s172 + $0x70] sm:$0xff] %vm2821, %v2771
      %2837 = vst.msk [vmem:[%s172 + $0x78] sm:$0xff] %vm2821, %v2772
      %2838 = vst.msk [vmem:[%s172 + $0x80] sm:$0xff] %vm2821, %v2773
      %2839 = vst.msk [vmem:[%s172 + $0x88] sm:$0xff] %vm2821, %v2774
      %2840 = vst.msk [vmem:[%s172 + $0x90] sm:$0xff] %vm2821, %v2775
      %2841 = vst.msk [vmem:[%s172 + $0x98] sm:$0xff] %vm2821, %v2776
      %2842 = vst.msk [vmem:[%s172 + $0xa0] sm:$0xff] %vm2821, %v2777
      %2843 = vst.msk [vmem:[%s172 + $0xa8] sm:$0xff] %vm2821, %v2778
      %2844 = vst.msk [vmem:[%s172 + $0xb0] sm:$0xff] %vm2821, %v2779
      %2845 = vst.msk [vmem:[%s172 + $0xb8] sm:$0xff] %vm2821, %v2780
      %2846 = vst.msk [vmem:[%s172 + $0xc0] sm:$0xff] %vm2821, %v2781
      %2847 = vst.msk [vmem:[%s172 + $0xc8] sm:$0xff] %vm2821, %v2782
      %2848 = vst.msk [vmem:[%s172 + $0xd0] sm:$0xff] %vm2821, %v2783
      %2849 = vst.msk [vmem:[%s172 + $0xd8] sm:$0xff] %vm2821, %v2784
      %2850 = vst.msk [vmem:[%s172 + $0xe0] sm:$0xff] %vm2821, %v2785
      %2851 = vst.msk [vmem:[%s172 + $0xe8] sm:$0xff] %vm2821, %v2786
      %2852 = vst.msk [vmem:[%s172 + $0xf0] sm:$0xff] %vm2821, %v2787
      %2853 = vst.msk [vmem:[%s172 + $0xf8] sm:$0xff] %vm2821, %v2788
      %2854 = vst.msk [vmem:[%s172 + $0x100] sm:$0xff] %vm2821, %v2789
      %2855 = vst.msk [vmem:[%s172 + $0x108] sm:$0xff] %vm2821, %v2790
      %2856 = vst.msk [vmem:[%s172 + $0x110] sm:$0xff] %vm2821, %v2791
      %2857 = vst.msk [vmem:[%s172 + $0x118] sm:$0xff] %vm2821, %v2792
      %2858 = vst.msk [vmem:[%s172 + $0x120] sm:$0xff] %vm2821, %v2793
      %2859 = vst.msk [vmem:[%s172 + $0x128] sm:$0xff] %vm2821, %v2794
      %2860 = vst.msk [vmem:[%s172 + $0x130] sm:$0xff] %vm2821, %v2795
      %2861 = vst.msk [vmem:[%s172 + $0x138] sm:$0xff] %vm2821, %v2796
      %2862 = vst.msk [vmem:[%s172 + $0x140] sm:$0xff] %vm2821, %v2797
      %2863 = vst.msk [vmem:[%s172 + $0x148] sm:$0xff] %vm2821, %v2798
      %2864 = vst.msk [vmem:[%s172 + $0x150] sm:$0xff] %vm2821, %v2799
      %2865 = vst.msk [vmem:[%s172 + $0x158] sm:$0xff] %vm2821, %v2800
      %2866 = vst.msk [vmem:[%s172 + $0x160] sm:$0xff] %vm2821, %v2801
      %2867 = vst.msk [vmem:[%s172 + $0x168] sm:$0xff] %vm2821, %v2802
      %2868 = vst.msk [vmem:[%s172 + $0x170] sm:$0xff] %vm2821, %v2803
      %2869 = vst.msk [vmem:[%s172 + $0x178] sm:$0xff] %vm2821, %v2804
      %2870 = vst.msk [vmem:[%s172 + $0x180] sm:$0xff] %vm2821, %v2805
      %2871 = vst.msk [vmem:[%s172 + $0x188] sm:$0xff] %vm2821, %v2806
      %2872 = vst.msk [vmem:[%s172 + $0x190] sm:$0xff] %vm2821, %v2807
      %2873 = vst.msk [vmem:[%s172 + $0x198] sm:$0xff] %vm2821, %v2808
      %2874 = vst.msk [vmem:[%s172 + $0x1a0] sm:$0xff] %vm2821, %v2809
      %2875 = vst.msk [vmem:[%s172 + $0x1a8] sm:$0xff] %vm2821, %v2810
      %2876 = vst.msk [vmem:[%s172 + $0x1b0] sm:$0xff] %vm2821, %v2811
      %2877 = vst.msk [vmem:[%s172 + $0x1b8] sm:$0xff] %vm2821, %v2812
      %2878 = vst.msk [vmem:[%s172 + $0x1c0] sm:$0xff] %vm2821, %v2813
      %2879 = vst.msk [vmem:[%s172 + $0x1c8] sm:$0xff] %vm2821, %v2814
      %2880 = vst.msk [vmem:[%s172 + $0x1d0] sm:$0xff] %vm2821, %v2815
      %2881 = vst.msk [vmem:[%s172 + $0x1d8] sm:$0xff] %vm2821, %v2816
      %2882 = vst.msk [vmem:[%s172 + $0x1e0] sm:$0xff] %vm2821, %v2817
      %2883 = vst.msk [vmem:[%s172 + $0x1e8] sm:$0xff] %vm2821, %v2818
      %2884 = vst.msk [vmem:[%s172 + $0x1f0] sm:$0xff] %vm2821, %v2819
      %2885 = vst.msk [vmem:[%s172 + $0x1f8] sm:$0xff] %vm2821, %v2820
      %s2886 = smul.u32 64, %s14
      %p2887 = scmp.lt.s32.totalorder %s2886, 127
      %s2888 = scalar_select %p2887, %s2886, 127
      %s2889 = smul.addr %s2888, 8
      %s2890 = scalar_lea.vmem %s3, %s2889
      // Predicated region
      $region33: #{tpu_custom_call.1} parent=31 // pred_check
        %p2891 = pneg %p100
      $region34: #{tpu_custom_call.1} parent=31 // pred_check_branch
        %2893 = sbr.rel (%p2891) target = $region36
      $region35: #{tpu_custom_call.1} parent=31 // pred_region
        %s2894 = smul.u32 64, %s14
      $region36: #{tpu_custom_call.1} parent=31 // pred_fallthru
        _
    $region32: #{tpu_custom_call.1} parent=5 // pred_fallthru
      _
    %p2895 = scmp.le.s32.totalorder 2, %s9
    // Predicated region
    $region37: #{tpu_custom_call.1} parent=5 // pred_check
      %p2896 = pneg %p2895
    $region38: #{tpu_custom_call.1} parent=5 // pred_check_branch
      %2898 = sbr.rel (%p2896) target = $region40
    $region39: #{tpu_custom_call.1} parent=5 // pred_region
      %s2899 = ssub.s32 %s9, 2
      // Predicated region
      $region41: #{tpu_custom_call.1} parent=39 // pred_check
        %p2900 = pneg %p106
      $region42: #{tpu_custom_call.1} parent=39 // pred_check_branch
        %2902 = sbr.rel (%p2900) target = $region44
      $region43: #{tpu_custom_call.1} parent=39 // pred_region
        %s2903 = smul.u32 64, %s15
        %p2904 = scmp.lt.s32.totalorder %s2903, 127
        %s2905 = scalar_select %p2904, %s2903, 127
        %s2906 = smul.addr %s2905, 8
        %s2907 = scalar_lea.vmem %s3, %s2906
      $region44: #{tpu_custom_call.1} parent=39 // pred_fallthru
        _
    $region40: #{tpu_custom_call.1} parent=5 // pred_fallthru
      _
  $region6: #{tpu_custom_call.1} parent=0 // loop_footer
    %s13 = sadd.s32 1, %s9
  $region7: #{tpu_custom_call.1} parent=0 // loop_footer_branch
    %8 = sbr.rel target = $region3
  $region8: #{tpu_custom_call.1} parent=0 // loop_exit
    _

</llo_original>
